<compile_context>
chip_gen: v7x
topology: tpu7x:2x2x1
jax: 0.10.0
libtpu: 0.0.40
codegen_flags: <defaults>
</compile_context>

<pallas_src>
import jax
import jax.numpy as jnp
from jax.experimental import pallas as pl
from jax.experimental.pallas import tpu as pltpu

HIDDEN_LAYERS = 4
HIDDEN_DIM = 50      # KuramotoSivashinskyNet defaults
PAD = 64             # padded hidden width (bf16 sublane tile is 16 -> 64 is exact)
OUT_PAD = 8          # padded output rows (one f32 sublane tile)


def _mlp_kernel(xt_ref, w0_ref, wh_ref, wo_ref, b_ref, bo_ref, o_ref):
    """Full MLP forward for one batch tile; features on sublanes, batch on lanes.

    xt_ref : (2, tile_n)        f32   [x; t] stacked, batch on the lane axis
    w0_ref : (PAD, 2)           f32   first Linear (torch (out, in)), zero-padded
    wh_ref : (L, PAD, PAD)      bf16  hidden Linears, zero-padded
    wo_ref : (OUT_PAD, PAD)     bf16  final Linear (1 x hidden), zero-padded rows
    b_ref  : (L + 1, PAD, 1)    f32   layer-0 + hidden biases, zero-padded
    bo_ref : (OUT_PAD, 1)       f32   output bias in row 0, zeros elsewhere
    o_ref  : (1, tile_n)        f32   lane-dense output row
    """
    # ---- Layer 0: K=2 done on the VPU as two broadcast FMAs (full f32). ----
    h = w0_ref[:, 0:1] * xt_ref[0:1, :] + w0_ref[:, 1:2] * xt_ref[1:2, :]
    h = jnp.tanh(h + b_ref[0])

    # ---- Hidden layers: bf16 operands into the MXU, f32 accumulation. ------
    n_hidden = wh_ref.shape[0]
    for j in range(n_hidden):
        h = jnp.dot(wh_ref[j], h.astype(jnp.bfloat16),
                    preferred_element_type=jnp.float32)
        h = jnp.tanh(h + b_ref[j + 1])

    # ---- Output layer: (OUT_PAD, PAD) @ (PAD, tile_n) -> (OUT_PAD, tile_n). -
    # Padded rows have zero weights AND zero bias, so only row 0 is real.
    y = jnp.dot(wo_ref[...], h.astype(jnp.bfloat16),
                preferred_element_type=jnp.float32) + bo_ref[...]
    o_ref[...] = y[0:1, :].astype(o_ref.dtype)


def _choose_tile(N, tile_n):
    """Pick a 128-aligned batch tile that divides N, preferring >= 2 grid steps."""
    tile_n = min(tile_n, N)
    if N % 128 != 0:
        return N                      # ragged batch: single full-batch tile
    if tile_n == N and N % 256 == 0:
        tile_n = N // 2               # guarantee >= 2 grid steps (v7x: 2 TCs)
    tile_n = max(128, (tile_n // 128) * 128)
    while N % tile_n != 0:
        tile_n -= 128
    return tile_n


def ks_net_forward(x, t, packed_params, *, tile_n=2048):
    """Pallas forward pass of KuramotoSivashinskyNet.

    x, t: (N, 1) float32. packed_params = pack_params(init_params(...)).
    Batch lives on the 128-lane axis; the grid tiles the batch dimension only.
    """
    w0, wh, wo, b, bo = packed_params
    N = x.shape[0]
    tile_n = _choose_tile(N, tile_n)
    assert N % tile_n == 0
    assert tile_n == N or tile_n % 128 == 0

    # Stack [x; t] once in XLA -> (2, N): batch on lanes, no in-kernel concat.
    xt = jnp.concatenate([x, t], axis=1).T

    const = dict(pipeline_mode=pl.Buffered(1))  # constant index_map -> 1 buffer
    out = pl.pallas_call(
        _mlp_kernel,
        out_shape=jax.ShapeDtypeStruct((1, N), jnp.float32),
        grid_spec=pltpu.PrefetchScalarGridSpec(
            num_scalar_prefetch=0,
            grid=(N // tile_n,),
            in_specs=[
                pl.BlockSpec((2, tile_n), lambda i: (0, i)),       # xt tile
                pl.BlockSpec(w0.shape, lambda i: (0, 0), **const),     # layer-0 W
                pl.BlockSpec(wh.shape, lambda i: (0, 0, 0), **const),  # hidden Ws
                pl.BlockSpec(wo.shape, lambda i: (0, 0), **const),     # output W
                pl.BlockSpec(b.shape, lambda i: (0, 0, 0), **const),   # biases
                pl.BlockSpec(bo.shape, lambda i: (0, 0), **const),     # output bias
            ],
            out_specs=pl.BlockSpec((1, tile_n), lambda i: (0, i)),
        ),
        compiler_params=pltpu.CompilerParams(
            dimension_semantics=("parallel",),
            vmem_limit_bytes=64 * 1024 * 1024),
    )(xt, w0, wh, wo, b, bo)

    return out.reshape(N, 1)


def init_params(key, hidden_layers=HIDDEN_LAYERS, hidden_dim=HIDDEN_DIM):
    """torch.nn.Linear-style init, weights kept in torch (out, in) layout."""
    dims = [2] + [hidden_dim] * (hidden_layers + 1) + [1]
    params = []
    for i in range(len(dims) - 1):
        fan_in, fan_out = dims[i], dims[i + 1]
        key, kw, kb = jax.random.split(key, 3)
        bound = 1.0 / jnp.sqrt(fan_in)
        w = jax.random.uniform(kw, (fan_out, fan_in), jnp.float32, -bound, bound)
        b = jax.random.uniform(kb, (fan_out,), jnp.float32, -bound, bound)
        params.append((w, b))
    return params


def pack_params(params, pad=PAD, out_pad=OUT_PAD):
    """Zero-pad and pack per-layer (W (out,in), b (out,)) params for the kernel."""
    (w0, _), hidden, (w_out, b_out) = params[0], params[1:-1], params[-1]

    w0_p = jnp.zeros((pad, w0.shape[1]), jnp.float32).at[: w0.shape[0], :].set(w0)
    wh_p = jnp.stack([
        jnp.zeros((pad, pad), jnp.float32).at[: w.shape[0], : w.shape[1]].set(w)
        for w, _ in hidden
    ]).astype(jnp.bfloat16)
    wo_p = (jnp.zeros((out_pad, pad), jnp.float32)
            .at[: w_out.shape[0], : w_out.shape[1]].set(w_out)
            .astype(jnp.bfloat16))
    b_p = jnp.stack([
        jnp.zeros((pad, 1), jnp.float32).at[: b.shape[0], 0].set(b)
        for _, b in ([params[0]] + list(hidden))
    ])
    bo_p = jnp.zeros((out_pad, 1), jnp.float32).at[: b_out.shape[0], 0].set(b_out)
    return w0_p, wh_p, wo_p, b_p, bo_p


def reference_forward(x, t, params):
    """Pure-JAX f32 reference (torch semantics) for sanity checking."""
    h = jnp.concatenate([x, t], axis=1)
    for i, (w, b) in enumerate(params):
        h = h @ w.T + b
        if i < len(params) - 1:
            h = jnp.tanh(h)
    return h


if __name__ == "__main__":
    key = jax.random.PRNGKey(0)
    kp, kx, kt = jax.random.split(key, 3)

    N = 1024  # collocation points; auto tile_n=512 -> 2 grid steps (both v7x TCs busy)
    x = jax.random.uniform(kx, (N, 1), jnp.float32, -1.0, 1.0)
    t = jax.random.uniform(kt, (N, 1), jnp.float32, 0.0, 1.0)

    params = init_params(kp)
    packed = pack_params(params)

    out = ks_net_forward(x, t, packed)
    out = jax.block_until_ready(out)

    ref = reference_forward(x, t, params)
    assert out.shape == (N, 1)
    err = float(jnp.max(jnp.abs(out - ref)))
    # bf16 MXU operands => tolerance relaxed vs the f32 reference (review note).
    assert err < 5e-2, f"max abs error {err}"

    print("KERNEL_OK")
</pallas_src>

<mosaic_0001>
module attributes {stable_mosaic.version = 11 : i64} {
  func.func @_mlp_kernel(%arg0: i32, %arg1: memref<2x512xf32, #tpu.memory_space<vmem>>, %arg2: memref<64x2xf32, #tpu.memory_space<vmem>>, %arg3: memref<4x64x64xbf16, #tpu.memory_space<vmem>>, %arg4: memref<8x64xbf16, #tpu.memory_space<vmem>>, %arg5: memref<5x64x1xf32, #tpu.memory_space<vmem>>, %arg6: memref<8x1xf32, #tpu.memory_space<vmem>>, %arg7: memref<1x512xf32, #tpu.memory_space<vmem>>) attributes {dimension_semantics = [#tpu.dimension_semantics<parallel>], iteration_bounds = array<i64: 2>, scalar_prefetch = 0 : i64, scratch_operands = 0 : i64, tpu.core_type = #tpu.core_type<tc>, window_params = [{transform_indices = @transform_0, window_bounds = array<i64: 2, 512>}, {pipeline_mode = #tpu.pipeline_mode<synchronous>, transform_indices = @transform_1, window_bounds = array<i64: 64, 2>}, {pipeline_mode = #tpu.pipeline_mode<synchronous>, transform_indices = @transform_2, window_bounds = array<i64: 4, 64, 64>}, {pipeline_mode = #tpu.pipeline_mode<synchronous>, transform_indices = @transform_3, window_bounds = array<i64: 8, 64>}, {pipeline_mode = #tpu.pipeline_mode<synchronous>, transform_indices = @transform_4, window_bounds = array<i64: 5, 64, 1>}, {pipeline_mode = #tpu.pipeline_mode<synchronous>, transform_indices = @transform_5, window_bounds = array<i64: 8, 1>}, {transform_indices = @transform_6, window_bounds = array<i64: 1, 512>}]} {
    %c0 = arith.constant 0 : index
    %c0_0 = arith.constant 0 : index
    %0 = vector.load %arg2[%c0, %c0_0] : memref<64x2xf32, #tpu.memory_space<vmem>>, vector<64x1xf32>
    %c0_1 = arith.constant 0 : index
    %c0_2 = arith.constant 0 : index
    %1 = vector.load %arg1[%c0_1, %c0_2] : memref<2x512xf32, #tpu.memory_space<vmem>>, vector<1x512xf32>
    %2 = vector.broadcast %0 : vector<64x1xf32> to vector<64x512xf32>
    %3 = vector.broadcast %1 : vector<1x512xf32> to vector<64x512xf32>
    %4 = arith.mulf %2, %3 : vector<64x512xf32>
    %c0_3 = arith.constant 0 : index
    %c1 = arith.constant 1 : index
    %5 = vector.load %arg2[%c0_3, %c1] : memref<64x2xf32, #tpu.memory_space<vmem>>, vector<64x1xf32>
    %c1_4 = arith.constant 1 : index
    %c0_5 = arith.constant 0 : index
    %6 = vector.load %arg1[%c1_4, %c0_5] : memref<2x512xf32, #tpu.memory_space<vmem>>, vector<1x512xf32>
    %7 = vector.broadcast %5 : vector<64x1xf32> to vector<64x512xf32>
    %8 = vector.broadcast %6 : vector<1x512xf32> to vector<64x512xf32>
    %9 = arith.mulf %7, %8 : vector<64x512xf32>
    %10 = arith.addf %4, %9 : vector<64x512xf32>
    %c0_6 = arith.constant 0 : index
    %c0_7 = arith.constant 0 : index
    %c0_8 = arith.constant 0 : index
    %11 = vector.load %arg5[%c0_6, %c0_7, %c0_8] : memref<5x64x1xf32, #tpu.memory_space<vmem>>, vector<1x64x1xf32>
    %12 = vector.shape_cast %11 : vector<1x64x1xf32> to vector<64x1xf32>
    %13 = vector.broadcast %12 : vector<64x1xf32> to vector<64x512xf32>
    %14 = arith.addf %10, %13 : vector<64x512xf32>
    %15 = math.tanh %14 : vector<64x512xf32>
    %c0_9 = arith.constant 0 : index
    %c0_10 = arith.constant 0 : index
    %c0_11 = arith.constant 0 : index
    %16 = vector.load %arg3[%c0_9, %c0_10, %c0_11] : memref<4x64x64xbf16, #tpu.memory_space<vmem>>, vector<1x64x64xbf16>
    %17 = vector.shape_cast %16 : vector<1x64x64xbf16> to vector<64x64xbf16>
    %18 = arith.truncf %15 : vector<64x512xf32> to vector<64x512xbf16>
    %cst = arith.constant dense<0.000000e+00> : vector<64x512xf32>
    %19 = tpu.matmul %17, %18, %cst {dimension_numbers = #tpu.dot_dimension_numbers<[1], [0], [0], [1], [0, 0, 1, 1], [], []>} : vector<64x64xbf16>, vector<64x512xbf16>, vector<64x512xf32> -> vector<64x512xf32>
    %c1_12 = arith.constant 1 : index
    %c0_13 = arith.constant 0 : index
    %c0_14 = arith.constant 0 : index
    %20 = vector.load %arg5[%c1_12, %c0_13, %c0_14] : memref<5x64x1xf32, #tpu.memory_space<vmem>>, vector<1x64x1xf32>
    %21 = vector.shape_cast %20 : vector<1x64x1xf32> to vector<64x1xf32>
    %22 = vector.broadcast %21 : vector<64x1xf32> to vector<64x512xf32>
    %23 = arith.addf %19, %22 : vector<64x512xf32>
    %24 = math.tanh %23 : vector<64x512xf32>
    %c1_15 = arith.constant 1 : index
    %c0_16 = arith.constant 0 : index
    %c0_17 = arith.constant 0 : index
    %25 = vector.load %arg3[%c1_15, %c0_16, %c0_17] : memref<4x64x64xbf16, #tpu.memory_space<vmem>>, vector<1x64x64xbf16>
    %26 = vector.shape_cast %25 : vector<1x64x64xbf16> to vector<64x64xbf16>
    %27 = arith.truncf %24 : vector<64x512xf32> to vector<64x512xbf16>
    %cst_18 = arith.constant dense<0.000000e+00> : vector<64x512xf32>
    %28 = tpu.matmul %26, %27, %cst_18 {dimension_numbers = #tpu.dot_dimension_numbers<[1], [0], [0], [1], [0, 0, 1, 1], [], []>} : vector<64x64xbf16>, vector<64x512xbf16>, vector<64x512xf32> -> vector<64x512xf32>
    %c2 = arith.constant 2 : index
    %c0_19 = arith.constant 0 : index
    %c0_20 = arith.constant 0 : index
    %29 = vector.load %arg5[%c2, %c0_19, %c0_20] : memref<5x64x1xf32, #tpu.memory_space<vmem>>, vector<1x64x1xf32>
    %30 = vector.shape_cast %29 : vector<1x64x1xf32> to vector<64x1xf32>
    %31 = vector.broadcast %30 : vector<64x1xf32> to vector<64x512xf32>
    %32 = arith.addf %28, %31 : vector<64x512xf32>
    %33 = math.tanh %32 : vector<64x512xf32>
    %c2_21 = arith.constant 2 : index
    %c0_22 = arith.constant 0 : index
    %c0_23 = arith.constant 0 : index
    %34 = vector.load %arg3[%c2_21, %c0_22, %c0_23] : memref<4x64x64xbf16, #tpu.memory_space<vmem>>, vector<1x64x64xbf16>
    %35 = vector.shape_cast %34 : vector<1x64x64xbf16> to vector<64x64xbf16>
    %36 = arith.truncf %33 : vector<64x512xf32> to vector<64x512xbf16>
    %cst_24 = arith.constant dense<0.000000e+00> : vector<64x512xf32>
    %37 = tpu.matmul %35, %36, %cst_24 {dimension_numbers = #tpu.dot_dimension_numbers<[1], [0], [0], [1], [0, 0, 1, 1], [], []>} : vector<64x64xbf16>, vector<64x512xbf16>, vector<64x512xf32> -> vector<64x512xf32>
    %c3 = arith.constant 3 : index
    %c0_25 = arith.constant 0 : index
    %c0_26 = arith.constant 0 : index
    %38 = vector.load %arg5[%c3, %c0_25, %c0_26] : memref<5x64x1xf32, #tpu.memory_space<vmem>>, vector<1x64x1xf32>
    %39 = vector.shape_cast %38 : vector<1x64x1xf32> to vector<64x1xf32>
    %40 = vector.broadcast %39 : vector<64x1xf32> to vector<64x512xf32>
    %41 = arith.addf %37, %40 : vector<64x512xf32>
    %42 = math.tanh %41 : vector<64x512xf32>
    %c3_27 = arith.constant 3 : index
    %c0_28 = arith.constant 0 : index
    %c0_29 = arith.constant 0 : index
    %43 = vector.load %arg3[%c3_27, %c0_28, %c0_29] : memref<4x64x64xbf16, #tpu.memory_space<vmem>>, vector<1x64x64xbf16>
    %44 = vector.shape_cast %43 : vector<1x64x64xbf16> to vector<64x64xbf16>
    %45 = arith.truncf %42 : vector<64x512xf32> to vector<64x512xbf16>
    %cst_30 = arith.constant dense<0.000000e+00> : vector<64x512xf32>
    %46 = tpu.matmul %44, %45, %cst_30 {dimension_numbers = #tpu.dot_dimension_numbers<[1], [0], [0], [1], [0, 0, 1, 1], [], []>} : vector<64x64xbf16>, vector<64x512xbf16>, vector<64x512xf32> -> vector<64x512xf32>
    %c4 = arith.constant 4 : index
    %c0_31 = arith.constant 0 : index
    %c0_32 = arith.constant 0 : index
    %47 = vector.load %arg5[%c4, %c0_31, %c0_32] : memref<5x64x1xf32, #tpu.memory_space<vmem>>, vector<1x64x1xf32>
    %48 = vector.shape_cast %47 : vector<1x64x1xf32> to vector<64x1xf32>
    %49 = vector.broadcast %48 : vector<64x1xf32> to vector<64x512xf32>
    %50 = arith.addf %46, %49 : vector<64x512xf32>
    %51 = math.tanh %50 : vector<64x512xf32>
    %c0_33 = arith.constant 0 : index
    %c0_34 = arith.constant 0 : index
    %52 = vector.load %arg4[%c0_33, %c0_34] : memref<8x64xbf16, #tpu.memory_space<vmem>>, vector<8x64xbf16>
    %53 = arith.truncf %51 : vector<64x512xf32> to vector<64x512xbf16>
    %cst_35 = arith.constant dense<0.000000e+00> : vector<8x512xf32>
    %54 = tpu.matmul %52, %53, %cst_35 {dimension_numbers = #tpu.dot_dimension_numbers<[1], [0], [0], [1], [0, 0, 1, 1], [], []>} : vector<8x64xbf16>, vector<64x512xbf16>, vector<8x512xf32> -> vector<8x512xf32>
    %c0_36 = arith.constant 0 : index
    %c0_37 = arith.constant 0 : index
    %55 = vector.load %arg6[%c0_36, %c0_37] : memref<8x1xf32, #tpu.memory_space<vmem>>, vector<8x1xf32>
    %56 = vector.broadcast %55 : vector<8x1xf32> to vector<8x512xf32>
    %57 = arith.addf %54, %56 : vector<8x512xf32>
    %58 = vector.extract_strided_slice %57 {offsets = [0, 0], sizes = [1, 512], strides = [1, 1]} : vector<8x512xf32> to vector<1x512xf32>
    %c0_38 = arith.constant 0 : index
    %c0_39 = arith.constant 0 : index
    %59 = vector.load %arg7[%c0_38, %c0_39] : memref<1x512xf32, #tpu.memory_space<vmem>>, vector<1x512xf32>
    tpu.vector_store %arg7[%c0_38, %c0_39], %58 {strides = array<i32>} : memref<1x512xf32, #tpu.memory_space<vmem>>, vector<1x512xf32>,
    return
  }
  func.func @transform_0(%arg0: i32) -> (i32, i32) {
    %c0_i32 = arith.constant 0 : i32
    %c0_i32_0 = arith.constant 0 : i32
    return %c0_i32, %arg0 : i32, i32
  }
  func.func @transform_1(%arg0: i32) -> (i32, i32) {
    %c0_i32 = arith.constant 0 : i32
    %c0_i32_0 = arith.constant 0 : i32
    %c0_i32_1 = arith.constant 0 : i32
    return %c0_i32, %c0_i32_0 : i32, i32
  }
  func.func @transform_2(%arg0: i32) -> (i32, i32, i32) {
    %c0_i32 = arith.constant 0 : i32
    %c0_i32_0 = arith.constant 0 : i32
    %c0_i32_1 = arith.constant 0 : i32
    %c0_i32_2 = arith.constant 0 : i32
    return %c0_i32, %c0_i32_0, %c0_i32_1 : i32, i32, i32
  }
  func.func @transform_3(%arg0: i32) -> (i32, i32) {
    %c0_i32 = arith.constant 0 : i32
    %c0_i32_0 = arith.constant 0 : i32
    %c0_i32_1 = arith.constant 0 : i32
    return %c0_i32, %c0_i32_0 : i32, i32
  }
  func.func @transform_4(%arg0: i32) -> (i32, i32, i32) {
    %c0_i32 = arith.constant 0 : i32
    %c0_i32_0 = arith.constant 0 : i32
    %c0_i32_1 = arith.constant 0 : i32
    %c0_i32_2 = arith.constant 0 : i32
    return %c0_i32, %c0_i32_0, %c0_i32_1 : i32, i32, i32
  }
  func.func @transform_5(%arg0: i32) -> (i32, i32) {
    %c0_i32 = arith.constant 0 : i32
    %c0_i32_0 = arith.constant 0 : i32
    %c0_i32_1 = arith.constant 0 : i32
    return %c0_i32, %c0_i32_0 : i32, i32
  }
  func.func @transform_6(%arg0: i32) -> (i32, i32) {
    %c0_i32 = arith.constant 0 : i32
    %c0_i32_0 = arith.constant 0 : i32
    return %c0_i32, %arg0 : i32, i32
  }
}

</mosaic_0001>

<llo_original>
// kernel: tpu_custom_call.1
$region0: #{tpu_custom_call.1}
  #allocation0 [shape = 'u32[]', space=smem, size = 0x4, offset = 0x4, fixed_abs, tag = 'smem constant byte address 0x4 - core index']
  #allocation1 [shape = 'u32[144,128]{1,0:T(1,128)}', space=vmem, size = 0x12000, scoped, tag = 'internal scratch']
  %s0 = inlined_call_operand.hbm [shape: f32[2,1024], index: 0, kind: input, shape index: {}]
  %s1 = inlined_call_operand.hbm [shape: f32[64,2], index: 1, kind: input, shape index: {}]
  %s2 = inlined_call_operand.hbm [shape: bf16[4,64,64], index: 2, kind: input, shape index: {}]
  %s3 = inlined_call_operand.hbm [shape: bf16[8,64], index: 3, kind: input, shape index: {}]
  %s4 = inlined_call_operand.hbm [shape: f32[5,64,1], index: 4, kind: input, shape index: {}]
  %s5 = inlined_call_operand.hbm [shape: f32[8,1], index: 5, kind: input, shape index: {}]
  %s6 = inlined_call_operand.hbm [shape: f32[1,1024], index: 6, kind: output, shape index: {}]
  %s7 = sld [smem:[#allocation0]]
  $region81: #{tpu_custom_call.1} parent=0
    _
  %s9 = ssub.s32 1, %s7
  %s10 = scalar_select 0, %s9, %s7
  $region1: #{tpu_custom_call.1} parent=0
    #allocation2 [shape = 'u8[8192]{0}', space=vmem, size = 0x2000, scoped, tag = 'input window, operand 0']
    #allocation3 [shape = 's32[2]{0}', space=sflag, size = 0x8, scoped, tag = 'scoped memory for tpu_custom_call.1']
    #allocation4 [shape = 's32[2]{0}', space=sflag, size = 0x8, scoped, tag = 'scoped memory for tpu_custom_call.1']
    #allocation5 [shape = 'u8[32768]{0}', space=vmem, size = 0x8000, scoped, tag = 'input window, operand 1, single buffered']
    #allocation6 [shape = 's32[1]{0}', space=sflag, size = 0x4, scoped, tag = 'scoped memory for tpu_custom_call.1']
    #allocation7 [shape = 'u8[65536]{0}', space=vmem, size = 0x10000, scoped, tag = 'input window, operand 2, single buffered']
    #allocation8 [shape = 'u8[2048]{0}', space=vmem, size = 0x800, scoped, tag = 'input window, operand 3, single buffered']
    #allocation9 [shape = 's32[1]{0}', space=sflag, size = 0x4, scoped, tag = 'scoped memory for tpu_custom_call.1']
    #allocation10 [shape = 'u8[163840]{0}', space=vmem, size = 0x28000, scoped, tag = 'input window, operand 4, single buffered']
    #allocation11 [shape = 'u8[4096]{0}', space=vmem, size = 0x1000, scoped, tag = 'input window, operand 5, single buffered']
    #allocation12 [shape = 's32[1]{0}', space=sflag, size = 0x4, scoped, tag = 'scoped memory for tpu_custom_call.1']
    #allocation13 [shape = 'u8[4096]{0}', space=vmem, size = 0x1000, scoped, tag = 'output window, operand 0']
    %11 = vsyncpa [#allocation3], 0
    %s12 = scalar_lea.sflag [#allocation3], 1
    %13 = vsyncpa %s12, 0
    %14 = vsyncpa [#allocation6], 0
    %15 = vsyncpa [#allocation9], 0
    %16 = vsyncpa [#allocation12], 0
    %17 = vsyncpa [#allocation4], 0
    %s18 = scalar_lea.sflag [#allocation4], 1
    %19 = vsyncpa %s18, 0
    loop: start=0, step=1, limit=4
    $region2: #{tpu_custom_call.1} parent=1 // loop_pre_header
      _
    $region3: #{tpu_custom_call.1} parent=1 // loop_header
      %s21 = sphi 0, %s25
      %p22 = scmp.ge.s32.totalorder %s21, 4
      %s31 = sphi 0, %s33
      %s34 = sphi 0, %s31
      %s35 = sphi 0, %s34
      %s51 = sphi 0, %s35
      %s55 = sphi 0, %s55
      %s57 = sphi 0, %s55
      %s58 = sphi 0, %s57
      %s72 = sphi 0, %s58
      %s76 = sphi 0, %s76
      %s78 = sphi 0, %s76
      %s79 = sphi 0, %s78
      %s93 = sphi 0, %s79
      %s97 = sphi 0, %s97
      %s99 = sphi 0, %s97
      %s100 = sphi 0, %s99
      %s114 = sphi 0, %s100
      %s118 = sphi 0, %s118
      %s120 = sphi 0, %s118
      %s121 = sphi 0, %s120
      %s135 = sphi 0, %s121
      %s139 = sphi 0, %s139
      %s141 = sphi 0, %s139
      %s142 = sphi 0, %s141
      %s156 = sphi 0, %s142
      %s162 = sphi 0, %s164
      %s165 = sphi 0, %s162
      %s166 = sphi 0, %s165
      %s182 = sphi 0, %s166
    $region4: #{tpu_custom_call.1} parent=1 // loop_header_branch
      %24 = sbr.rel (%p22) target = $region8
    $region5: #{tpu_custom_call.1} parent=1 // loop_body
      %s26 = ssub.s32 %s21, 1
      %s27 = ssub.s32 %s21, 2
      %s28 = sadd.s32 %s21, 1
      %s29 = ssub.s32 %s21, %s28
      %p30 = scmp.eq.s32.totalorder %s29, 0
      %s32 = sadd.s32 %s31, 1
      %s33 = scalar_select %p30, %s31, %s32
      %p36 = pneg %p30
      %p37 = scmp.eq.s32.totalorder %s21, 1
      %p38 = por %p36, %p37
      %p39 = scmp.ne.s32.totalorder %s31, %s34
      %p40 = scmp.eq.s32.totalorder %s21, 0
      %p41 = por %p39, %p40
      %p42 = scmp.ne.s32.totalorder %s31, %s34
      %p43 = scmp.eq.s32.totalorder %s26, 1
      %p44 = por %p42, %p43
      %p45 = scmp.ne.s32.totalorder %s34, %s35
      %p46 = scmp.eq.s32.totalorder %s26, 0
      %p47 = por %p45, %p46
      %p48 = scmp.ne.s32.totalorder %s34, %s35
      %p49 = scmp.eq.s32.totalorder %s27, 1
      %p50 = por %p48, %p49
      %p52 = scmp.ne.s32.totalorder %s35, %s51
      %p53 = scmp.eq.s32.totalorder %s27, 0
      %p54 = por %p52, %p53
      %s56 = sadd.s32 %s55, 1
      %p59 = scmp.eq.s32.totalorder %s21, 1
      %p60 = scmp.ne.s32.totalorder %s55, %s57
      %p61 = scmp.eq.s32.totalorder %s21, 0
      %p62 = por %p60, %p61
      %p63 = scmp.ne.s32.totalorder %s55, %s57
      %p64 = scmp.eq.s32.totalorder %s26, 1
      %p65 = por %p63, %p64
      %p66 = scmp.ne.s32.totalorder %s57, %s58
      %p67 = scmp.eq.s32.totalorder %s26, 0
      %p68 = por %p66, %p67
      %p69 = scmp.ne.s32.totalorder %s57, %s58
      %p70 = scmp.eq.s32.totalorder %s27, 1
      %p71 = por %p69, %p70
      %p73 = scmp.ne.s32.totalorder %s58, %s72
      %p74 = scmp.eq.s32.totalorder %s27, 0
      %p75 = por %p73, %p74
      %s77 = sadd.s32 %s76, 1
      %p80 = scmp.eq.s32.totalorder %s21, 1
      %p81 = scmp.ne.s32.totalorder %s76, %s78
      %p82 = scmp.eq.s32.totalorder %s21, 0
      %p83 = por %p81, %p82
      %p84 = scmp.ne.s32.totalorder %s76, %s78
      %p85 = scmp.eq.s32.totalorder %s26, 1
      %p86 = por %p84, %p85
      %p87 = scmp.ne.s32.totalorder %s78, %s79
      %p88 = scmp.eq.s32.totalorder %s26, 0
      %p89 = por %p87, %p88
      %p90 = scmp.ne.s32.totalorder %s78, %s79
      %p91 = scmp.eq.s32.totalorder %s27, 1
      %p92 = por %p90, %p91
      %p94 = scmp.ne.s32.totalorder %s79, %s93
      %p95 = scmp.eq.s32.totalorder %s27, 0
      %p96 = por %p94, %p95
      %s98 = sadd.s32 %s97, 1
      %p101 = scmp.eq.s32.totalorder %s21, 1
      %p102 = scmp.ne.s32.totalorder %s97, %s99
      %p103 = scmp.eq.s32.totalorder %s21, 0
      %p104 = por %p102, %p103
      %p105 = scmp.ne.s32.totalorder %s97, %s99
      %p106 = scmp.eq.s32.totalorder %s26, 1
      %p107 = por %p105, %p106
      %p108 = scmp.ne.s32.totalorder %s99, %s100
      %p109 = scmp.eq.s32.totalorder %s26, 0
      %p110 = por %p108, %p109
      %p111 = scmp.ne.s32.totalorder %s99, %s100
      %p112 = scmp.eq.s32.totalorder %s27, 1
      %p113 = por %p111, %p112
      %p115 = scmp.ne.s32.totalorder %s100, %s114
      %p116 = scmp.eq.s32.totalorder %s27, 0
      %p117 = por %p115, %p116
      %s119 = sadd.s32 %s118, 1
      %p122 = scmp.eq.s32.totalorder %s21, 1
      %p123 = scmp.ne.s32.totalorder %s118, %s120
      %p124 = scmp.eq.s32.totalorder %s21, 0
      %p125 = por %p123, %p124
      %p126 = scmp.ne.s32.totalorder %s118, %s120
      %p127 = scmp.eq.s32.totalorder %s26, 1
      %p128 = por %p126, %p127
      %p129 = scmp.ne.s32.totalorder %s120, %s121
      %p130 = scmp.eq.s32.totalorder %s26, 0
      %p131 = por %p129, %p130
      %p132 = scmp.ne.s32.totalorder %s120, %s121
      %p133 = scmp.eq.s32.totalorder %s27, 1
      %p134 = por %p132, %p133
      %p136 = scmp.ne.s32.totalorder %s121, %s135
      %p137 = scmp.eq.s32.totalorder %s27, 0
      %p138 = por %p136, %p137
      %s140 = sadd.s32 %s139, 1
      %p143 = scmp.eq.s32.totalorder %s21, 1
      %p144 = scmp.ne.s32.totalorder %s139, %s141
      %p145 = scmp.eq.s32.totalorder %s21, 0
      %p146 = por %p144, %p145
      %p147 = scmp.ne.s32.totalorder %s139, %s141
      %p148 = scmp.eq.s32.totalorder %s26, 1
      %p149 = por %p147, %p148
      %p150 = scmp.ne.s32.totalorder %s141, %s142
      %p151 = scmp.eq.s32.totalorder %s26, 0
      %p152 = por %p150, %p151
      %p153 = scmp.ne.s32.totalorder %s141, %s142
      %p154 = scmp.eq.s32.totalorder %s27, 1
      %p155 = por %p153, %p154
      %p157 = scmp.ne.s32.totalorder %s142, %s156
      %p158 = scmp.eq.s32.totalorder %s27, 0
      %p159 = por %p157, %p158
      %s160 = ssub.s32 %s21, %s28
      %p161 = scmp.eq.s32.totalorder %s160, 0
      %s163 = sadd.s32 %s162, 1
      %s164 = scalar_select %p161, %s162, %s163
      %p167 = pneg %p161
      %p168 = scmp.eq.s32.totalorder %s21, 1
      %p169 = por %p167, %p168
      %p170 = scmp.ne.s32.totalorder %s162, %s165
      %p171 = scmp.eq.s32.totalorder %s21, 0
      %p172 = por %p170, %p171
      %p173 = scmp.ne.s32.totalorder %s162, %s165
      %p174 = scmp.eq.s32.totalorder %s26, 1
      %p175 = por %p173, %p174
      %p176 = scmp.ne.s32.totalorder %s165, %s166
      %p177 = scmp.eq.s32.totalorder %s26, 0
      %p178 = por %p176, %p177
      %p179 = scmp.ne.s32.totalorder %s165, %s166
      %p180 = scmp.eq.s32.totalorder %s27, 1
      %p181 = por %p179, %p180
      %p183 = scmp.ne.s32.totalorder %s166, %s182
      %p184 = scmp.eq.s32.totalorder %s27, 0
      %p185 = por %p183, %p184
      %p186 = scmp.le.s32.totalorder 1, %s21
      %p187 = scmp.lt.s32.totalorder %s21, 3
      %p188 = pnand %p186, %p187
      %p189 = pneg %p188
      // Predicated region
      $region9: #{tpu_custom_call.1} parent=5 // pred_check
        _
      $region10: #{tpu_custom_call.1} parent=5 // pred_check_branch
        %191 = sbr.rel (%p188) target = $region12
      $region11: #{tpu_custom_call.1} parent=5 // pred_region
        %s192 = ssub.s32 %s21, 1
        // Predicated region
        $region13: #{tpu_custom_call.1} parent=11 // pred_check
          %p193 = pneg %p68
        $region14: #{tpu_custom_call.1} parent=11 // pred_check_branch
          %195 = sbr.rel (%p193) target = $region16
        $region15: #{tpu_custom_call.1} parent=11 // pred_region
          %s197 = ssub.s32 1024, 1024
          %198 = vsyncadd [#allocation6], %s197
          %s199 = sshll.u32 [#allocation5], 4
          %s200 = int_to_ptr.vmem [resolvable:$true] %s199
          %205 = dma.hbm_to_vmem [thread:$0]  %s1, 1024, %s200, [#allocation6], 128, 128, 8
        $region16: #{tpu_custom_call.1} parent=11 // pred_fallthru
          _
        // Predicated region
        $region17: #{tpu_custom_call.1} parent=11 // pred_check
          %p206 = pneg %p89
        $region18: #{tpu_custom_call.1} parent=11 // pred_check_branch
          %208 = sbr.rel (%p206) target = $region20
        $region19: #{tpu_custom_call.1} parent=11 // pred_region
          %s210 = ssub.s32 2048, 2048
          %211 = vsyncadd [#allocation6], %s210
          %s212 = sshll.u32 [#allocation7], 4
          %s213 = int_to_ptr.vmem [resolvable:$true] %s212
          %218 = dma.hbm_to_vmem [thread:$0]  %s2, 2048, %s213, [#allocation6], 64, 64, 4
        $region20: #{tpu_custom_call.1} parent=11 // pred_fallthru
          _
        // Predicated region
        $region21: #{tpu_custom_call.1} parent=11 // pred_check
          %p219 = pneg %p110
        $region22: #{tpu_custom_call.1} parent=11 // pred_check_branch
          %221 = sbr.rel (%p219) target = $region24
        $region23: #{tpu_custom_call.1} parent=11 // pred_region
          %s223 = ssub.s32 64, 64
          %224 = vsyncadd [#allocation9], %s223
          %s226 = sshll.u32 [#allocation8], 4
          %s227 = int_to_ptr.vmem [resolvable:$true] %s226
          %229 = dma.hbm_to_vmem [thread:$0]  %s3, 64, %s227, [#allocation9]
        $region24: #{tpu_custom_call.1} parent=11 // pred_fallthru
          _
        // Predicated region
        $region25: #{tpu_custom_call.1} parent=11 // pred_check
          %p230 = pneg %p131
        $region26: #{tpu_custom_call.1} parent=11 // pred_check_branch
          %232 = sbr.rel (%p230) target = $region28
        $region27: #{tpu_custom_call.1} parent=11 // pred_region
          %s234 = ssub.s32 5120, 5120
          %235 = vsyncadd [#allocation9], %s234
          %s236 = sshll.u32 [#allocation10], 4
          %s237 = int_to_ptr.vmem [resolvable:$true] %s236
          %242 = dma.hbm_to_vmem [thread:$0]  %s4, 5120, %s237, [#allocation9], 128, 128, 8
        $region28: #{tpu_custom_call.1} parent=11 // pred_fallthru
          _
        // Predicated region
        $region29: #{tpu_custom_call.1} parent=11 // pred_check
          %p243 = pneg %p152
        $region30: #{tpu_custom_call.1} parent=11 // pred_check_branch
          %245 = sbr.rel (%p243) target = $region32
        $region31: #{tpu_custom_call.1} parent=11 // pred_region
          %s247 = ssub.s32 128, 128
          %248 = vsyncadd [#allocation12], %s247
          %s250 = sshll.u32 [#allocation11], 4
          %s251 = int_to_ptr.vmem [resolvable:$true] %s250
          %253 = dma.hbm_to_vmem [thread:$0]  %s5, 128, %s251, [#allocation12]
        $region32: #{tpu_custom_call.1} parent=11 // pred_fallthru
          _
      $region12: #{tpu_custom_call.1} parent=5 // pred_fallthru
        _
      %p254 = scmp.lt.s32.totalorder %s21, 2
      // Predicated region
      $region33: #{tpu_custom_call.1} parent=5 // pred_check
        %p255 = pneg %p254
      $region34: #{tpu_custom_call.1} parent=5 // pred_check_branch
        %257 = sbr.rel (%p255) target = $region36
      $region35: #{tpu_custom_call.1} parent=5 // pred_region
        // Predicated region
        $region37: #{tpu_custom_call.1} parent=35 // pred_check
          %p258 = pneg %p41
        $region38: #{tpu_custom_call.1} parent=35 // pred_check_branch
          %260 = sbr.rel (%p258) target = $region40
        $region39: #{tpu_custom_call.1} parent=35 // pred_region
          %s261 = sand.u32 %s31, 1
          %s262 = scalar_lea.sflag [#allocation3], %s261
          %s263 = sand.u32 %s31, 1
          %s264 = smul.addr %s263, 8
          %s265 = scalar_lea.vmem [#allocation2], %s264
          %s266 = smul.u32 4, %s21
          %s268 = ssub.s32 128, 128
          %269 = vsyncadd %s262, %s268
          %s270 = smul.addr %s266, 32
          %s271 = scalar_lea.hbm %s0, %s270
          %s273 = sshll.u32 %s265, 4
          %s274 = int_to_ptr.vmem [resolvable:$true] %s273
          %276 = dma.hbm_to_vmem [thread:$0]  %s271, 128, %s274, %s262
        $region40: #{tpu_custom_call.1} parent=35 // pred_fallthru
          _
      $region36: #{tpu_custom_call.1} parent=5 // pred_fallthru
        _
      %p277 = scmp.le.s32.totalorder 1, %s21
      %p278 = scmp.lt.s32.totalorder %s21, 3
      %p279 = pnand %p277, %p278
      %p280 = pneg %p279
      // Predicated region
      $region41: #{tpu_custom_call.1} parent=5 // pred_check
        _
      $region42: #{tpu_custom_call.1} parent=5 // pred_check_branch
        %282 = sbr.rel (%p279) target = $region44
      $region43: #{tpu_custom_call.1} parent=5 // pred_region
        %s283 = ssub.s32 %s21, 1
        %s284 = sand.u32 %s34, 1
        %s285 = scalar_lea.sflag [#allocation3], %s284
        %s286 = sand.u32 %s34, 1
        %s287 = smul.addr %s286, 8
        %s288 = scalar_lea.vmem [#allocation2], %s287
        // Predicated region
        $region45: #{tpu_custom_call.1} parent=43 // pred_check
          %p289 = pneg %p47
        $region46: #{tpu_custom_call.1} parent=43 // pred_check_branch
          %291 = sbr.rel (%p289) target = $region48
        $region47: #{tpu_custom_call.1} parent=43 // pred_region
          %292 = dma.done %s285, 128
        $region48: #{tpu_custom_call.1} parent=43 // pred_fallthru
          _
        // Predicated region
        $region49: #{tpu_custom_call.1} parent=43 // pred_check
          %p293 = pneg %p68
        $region50: #{tpu_custom_call.1} parent=43 // pred_check_branch
          %295 = sbr.rel (%p293) target = $region52
        $region51: #{tpu_custom_call.1} parent=43 // pred_region
          %296 = dma.done [#allocation6], 1024
        $region52: #{tpu_custom_call.1} parent=43 // pred_fallthru
          _
        // Predicated region
        $region53: #{tpu_custom_call.1} parent=43 // pred_check
          %p297 = pneg %p89
        $region54: #{tpu_custom_call.1} parent=43 // pred_check_branch
          %299 = sbr.rel (%p297) target = $region56
        $region55: #{tpu_custom_call.1} parent=43 // pred_region
          %300 = dma.done [#allocation6], 2048
        $region56: #{tpu_custom_call.1} parent=43 // pred_fallthru
          _
        // Predicated region
        $region57: #{tpu_custom_call.1} parent=43 // pred_check
          %p301 = pneg %p110
        $region58: #{tpu_custom_call.1} parent=43 // pred_check_branch
          %303 = sbr.rel (%p301) target = $region60
        $region59: #{tpu_custom_call.1} parent=43 // pred_region
          %304 = dma.done [#allocation9], 64
        $region60: #{tpu_custom_call.1} parent=43 // pred_fallthru
          _
        // Predicated region
        $region61: #{tpu_custom_call.1} parent=43 // pred_check
          %p305 = pneg %p131
        $region62: #{tpu_custom_call.1} parent=43 // pred_check_branch
          %307 = sbr.rel (%p305) target = $region64
        $region63: #{tpu_custom_call.1} parent=43 // pred_region
          %308 = dma.done [#allocation9], 5120
        $region64: #{tpu_custom_call.1} parent=43 // pred_fallthru
          _
        // Predicated region
        $region65: #{tpu_custom_call.1} parent=43 // pred_check
          %p309 = pneg %p152
        $region66: #{tpu_custom_call.1} parent=43 // pred_check_branch
          %311 = sbr.rel (%p309) target = $region68
        $region67: #{tpu_custom_call.1} parent=43 // pred_region
          %312 = dma.done [#allocation12], 128
        $region68: #{tpu_custom_call.1} parent=43 // pred_fallthru
          _
        %s313 = sand.u32 %s34, 1
        %s314 = scalar_lea.sflag [#allocation3], %s313
        %s315 = sand.u32 %s34, 1
        %s316 = smul.addr %s315, 8
        %s317 = scalar_lea.vmem [#allocation2], %s316
        %p318 = pneg %p47
        %p319 = pneg %p44
        %p320 = pneg %p68
        %p321 = pneg %p65
        %p322 = pneg %p89
        %p323 = pneg %p86
        %p324 = pneg %p110
        %p325 = pneg %p107
        %p326 = pneg %p131
        %p327 = pneg %p128
        %p328 = pneg %p152
        %p329 = pneg %p149
        %p330 = pneg %p178
        %p331 = pneg %p175
        %s332 = sand.u32 %s165, 1
        %s333 = scalar_lea.sflag [#allocation4], %s332
        %s334 = sand.u32 %s165, 1
        %s335 = smul.addr %s334, 4
        %s336 = scalar_lea.vmem [#allocation13], %s335
        %s337 = smul.u32 4, %s26
        %s338 = smul.u32 4, %s26
        %v340 = vld [vmem:[#allocation5] sm:$0xff]
        %v341 = vld [vmem:[#allocation5 + $0x8] sm:$0xff]
        %v342 = vld [vmem:[#allocation5 + $0x10] sm:$0xff]
        %v343 = vld [vmem:[#allocation5 + $0x18] sm:$0xff]
        %v344 = vld [vmem:[#allocation5 + $0x20] sm:$0xff]
        %v345 = vld [vmem:[#allocation5 + $0x28] sm:$0xff]
        %v346 = vld [vmem:[#allocation5 + $0x30] sm:$0xff]
        %v347 = vld [vmem:[#allocation5 + $0x38] sm:$0xff]
        %v348 = vld [vmem:[%s288] ss:$2 sm:$0xf]
        %350 = vset.pattern.permute.xlu0 0
        %351 = vperm.xlu0 %350, %v340
        %v352 = vpop.permute.xlu0 %351
        %355 = vset.pattern.permute.xlu0 0
        %356 = vperm.xlu0 %355, %v341
        %v357 = vpop.permute.xlu0 %356
        %360 = vset.pattern.permute.xlu0 0
        %361 = vperm.xlu0 %360, %v342
        %v362 = vpop.permute.xlu0 %361
        %365 = vset.pattern.permute.xlu0 0
        %366 = vperm.xlu0 %365, %v343
        %v367 = vpop.permute.xlu0 %366
        %370 = vset.pattern.permute.xlu0 0
        %371 = vperm.xlu0 %370, %v344
        %v372 = vpop.permute.xlu0 %371
        %375 = vset.pattern.permute.xlu0 0
        %376 = vperm.xlu0 %375, %v345
        %v377 = vpop.permute.xlu0 %376
        %380 = vset.pattern.permute.xlu0 0
        %381 = vperm.xlu0 %380, %v346
        %v382 = vpop.permute.xlu0 %381
        %385 = vset.pattern.permute.xlu0 0
        %386 = vperm.xlu0 %385, %v347
        %v387 = vpop.permute.xlu0 %386
        %v390 = vlaneseq
        %v391 = vshrl.u32 %v390, 7
        %v392 = vsub.s32 0, %v391
        %v393 = vrot.slane %v348, %v392
        %v394 = vlaneseq
        %v395 = vshrl.u32 %v394, 7
        %v396 = vsub.s32 1, %v395
        %v397 = vrot.slane %v348, %v396
        %v398 = vlaneseq
        %v399 = vshrl.u32 %v398, 7
        %v400 = vsub.s32 2, %v399
        %v401 = vrot.slane %v348, %v400
        %v402 = vlaneseq
        %v403 = vshrl.u32 %v402, 7
        %v404 = vsub.s32 3, %v403
        %v405 = vrot.slane %v348, %v404
        %v410 = vmul.f32 %v352, %v393
        %v411 = vmul.f32 %v352, %v397
        %v412 = vmul.f32 %v352, %v401
        %v413 = vmul.f32 %v352, %v405
        %v414 = vmul.f32 %v357, %v393
        %v415 = vmul.f32 %v357, %v397
        %v416 = vmul.f32 %v357, %v401
        %v417 = vmul.f32 %v357, %v405
        %v418 = vmul.f32 %v362, %v393
        %v419 = vmul.f32 %v362, %v397
        %v420 = vmul.f32 %v362, %v401
        %v421 = vmul.f32 %v362, %v405
        %v422 = vmul.f32 %v367, %v393
        %v423 = vmul.f32 %v367, %v397
        %v424 = vmul.f32 %v367, %v401
        %v425 = vmul.f32 %v367, %v405
        %v426 = vmul.f32 %v372, %v393
        %v427 = vmul.f32 %v372, %v397
        %v428 = vmul.f32 %v372, %v401
        %v429 = vmul.f32 %v372, %v405
        %v430 = vmul.f32 %v377, %v393
        %v431 = vmul.f32 %v377, %v397
        %v432 = vmul.f32 %v377, %v401
        %v433 = vmul.f32 %v377, %v405
        %v434 = vmul.f32 %v382, %v393
        %v435 = vmul.f32 %v382, %v397
        %v436 = vmul.f32 %v382, %v401
        %v437 = vmul.f32 %v382, %v405
        %v438 = vmul.f32 %v387, %v393
        %v439 = vmul.f32 %v387, %v397
        %v440 = vmul.f32 %v387, %v401
        %v441 = vmul.f32 %v387, %v405
        %s442 = scalar_lea.vmem %s288, 1 [#allocation2]
        %v443 = vld [vmem:[%s442] ss:$2 sm:$0xf]
        %444 = vset.pattern.permute.xlu0 1
        %445 = vperm.xlu0 %444, %v340
        %v446 = vpop.permute.xlu0 %445
        %448 = vset.pattern.permute.xlu0 1
        %449 = vperm.xlu0 %448, %v341
        %v450 = vpop.permute.xlu0 %449
        %452 = vset.pattern.permute.xlu0 1
        %453 = vperm.xlu0 %452, %v342
        %v454 = vpop.permute.xlu0 %453
        %456 = vset.pattern.permute.xlu0 1
        %457 = vperm.xlu0 %456, %v343
        %v458 = vpop.permute.xlu0 %457
        %460 = vset.pattern.permute.xlu0 1
        %461 = vperm.xlu0 %460, %v344
        %v462 = vpop.permute.xlu0 %461
        %464 = vset.pattern.permute.xlu0 1
        %465 = vperm.xlu0 %464, %v345
        %v466 = vpop.permute.xlu0 %465
        %468 = vset.pattern.permute.xlu0 1
        %469 = vperm.xlu0 %468, %v346
        %v470 = vpop.permute.xlu0 %469
        %472 = vset.pattern.permute.xlu0 1
        %473 = vperm.xlu0 %472, %v347
        %v474 = vpop.permute.xlu0 %473
        %v477 = vlaneseq
        %v478 = vshrl.u32 %v477, 7
        %v479 = vsub.s32 0, %v478
        %v480 = vrot.slane %v443, %v479
        %v481 = vlaneseq
        %v482 = vshrl.u32 %v481, 7
        %v483 = vsub.s32 1, %v482
        %v484 = vrot.slane %v443, %v483
        %v485 = vlaneseq
        %v486 = vshrl.u32 %v485, 7
        %v487 = vsub.s32 2, %v486
        %v488 = vrot.slane %v443, %v487
        %v489 = vlaneseq
        %v490 = vshrl.u32 %v489, 7
        %v491 = vsub.s32 3, %v490
        %v492 = vrot.slane %v443, %v491
        %v497 = vmul.f32 %v446, %v480
        %v498 = vmul.f32 %v446, %v484
        %v499 = vmul.f32 %v446, %v488
        %v500 = vmul.f32 %v446, %v492
        %v501 = vmul.f32 %v450, %v480
        %v502 = vmul.f32 %v450, %v484
        %v503 = vmul.f32 %v450, %v488
        %v504 = vmul.f32 %v450, %v492
        %v505 = vmul.f32 %v454, %v480
        %v506 = vmul.f32 %v454, %v484
        %v507 = vmul.f32 %v454, %v488
        %v508 = vmul.f32 %v454, %v492
        %v509 = vmul.f32 %v458, %v480
        %v510 = vmul.f32 %v458, %v484
        %v511 = vmul.f32 %v458, %v488
        %v512 = vmul.f32 %v458, %v492
        %v513 = vmul.f32 %v462, %v480
        %v514 = vmul.f32 %v462, %v484
        %v515 = vmul.f32 %v462, %v488
        %v516 = vmul.f32 %v462, %v492
        %v517 = vmul.f32 %v466, %v480
        %v518 = vmul.f32 %v466, %v484
        %v519 = vmul.f32 %v466, %v488
        %v520 = vmul.f32 %v466, %v492
        %v521 = vmul.f32 %v470, %v480
        %v522 = vmul.f32 %v470, %v484
        %v523 = vmul.f32 %v470, %v488
        %v524 = vmul.f32 %v470, %v492
        %v525 = vmul.f32 %v474, %v480
        %v526 = vmul.f32 %v474, %v484
        %v527 = vmul.f32 %v474, %v488
        %v528 = vmul.f32 %v474, %v492
        %v529 = vadd.f32 %v410, %v497
        %v530 = vadd.f32 %v411, %v498
        %v531 = vadd.f32 %v412, %v499
        %v532 = vadd.f32 %v413, %v500
        %v533 = vadd.f32 %v414, %v501
        %v534 = vadd.f32 %v415, %v502
        %v535 = vadd.f32 %v416, %v503
        %v536 = vadd.f32 %v417, %v504
        %v537 = vadd.f32 %v418, %v505
        %v538 = vadd.f32 %v419, %v506
        %v539 = vadd.f32 %v420, %v507
        %v540 = vadd.f32 %v421, %v508
        %v541 = vadd.f32 %v422, %v509
        %v542 = vadd.f32 %v423, %v510
        %v543 = vadd.f32 %v424, %v511
        %v544 = vadd.f32 %v425, %v512
        %v545 = vadd.f32 %v426, %v513
        %v546 = vadd.f32 %v427, %v514
        %v547 = vadd.f32 %v428, %v515
        %v548 = vadd.f32 %v429, %v516
        %v549 = vadd.f32 %v430, %v517
        %v550 = vadd.f32 %v431, %v518
        %v551 = vadd.f32 %v432, %v519
        %v552 = vadd.f32 %v433, %v520
        %v553 = vadd.f32 %v434, %v521
        %v554 = vadd.f32 %v435, %v522
        %v555 = vadd.f32 %v436, %v523
        %v556 = vadd.f32 %v437, %v524
        %v557 = vadd.f32 %v438, %v525
        %v558 = vadd.f32 %v439, %v526
        %v559 = vadd.f32 %v440, %v527
        %v560 = vadd.f32 %v441, %v528
        %v561 = vld [vmem:[#allocation10] sm:$0xff]
        %v562 = vld [vmem:[#allocation10 + $0x8] sm:$0xff]
        %v563 = vld [vmem:[#allocation10 + $0x10] sm:$0xff]
        %v564 = vld [vmem:[#allocation10 + $0x18] sm:$0xff]
        %v565 = vld [vmem:[#allocation10 + $0x20] sm:$0xff]
        %v566 = vld [vmem:[#allocation10 + $0x28] sm:$0xff]
        %v567 = vld [vmem:[#allocation10 + $0x30] sm:$0xff]
        %v568 = vld [vmem:[#allocation10 + $0x38] sm:$0xff]
        %570 = vset.pattern.permute.xlu0 0
        %571 = vperm.xlu0 %570, %v561
        %v572 = vpop.permute.xlu0 %571
        %575 = vset.pattern.permute.xlu0 0
        %576 = vperm.xlu0 %575, %v562
        %v577 = vpop.permute.xlu0 %576
        %580 = vset.pattern.permute.xlu0 0
        %581 = vperm.xlu0 %580, %v563
        %v582 = vpop.permute.xlu0 %581
        %585 = vset.pattern.permute.xlu0 0
        %586 = vperm.xlu0 %585, %v564
        %v587 = vpop.permute.xlu0 %586
        %590 = vset.pattern.permute.xlu0 0
        %591 = vperm.xlu0 %590, %v565
        %v592 = vpop.permute.xlu0 %591
        %595 = vset.pattern.permute.xlu0 0
        %596 = vperm.xlu0 %595, %v566
        %v597 = vpop.permute.xlu0 %596
        %600 = vset.pattern.permute.xlu0 0
        %601 = vperm.xlu0 %600, %v567
        %v602 = vpop.permute.xlu0 %601
        %605 = vset.pattern.permute.xlu0 0
        %606 = vperm.xlu0 %605, %v568
        %v607 = vpop.permute.xlu0 %606
        %v609 = vadd.f32 %v529, %v572
        %v610 = vadd.f32 %v530, %v572
        %v611 = vadd.f32 %v531, %v572
        %v612 = vadd.f32 %v532, %v572
        %v613 = vadd.f32 %v533, %v577
        %v614 = vadd.f32 %v534, %v577
        %v615 = vadd.f32 %v535, %v577
        %v616 = vadd.f32 %v536, %v577
        %v617 = vadd.f32 %v537, %v582
        %v618 = vadd.f32 %v538, %v582
        %v619 = vadd.f32 %v539, %v582
        %v620 = vadd.f32 %v540, %v582
        %v621 = vadd.f32 %v541, %v587
        %v622 = vadd.f32 %v542, %v587
        %v623 = vadd.f32 %v543, %v587
        %v624 = vadd.f32 %v544, %v587
        %v625 = vadd.f32 %v545, %v592
        %v626 = vadd.f32 %v546, %v592
        %v627 = vadd.f32 %v547, %v592
        %v628 = vadd.f32 %v548, %v592
        %v629 = vadd.f32 %v549, %v597
        %v630 = vadd.f32 %v550, %v597
        %v631 = vadd.f32 %v551, %v597
        %v632 = vadd.f32 %v552, %v597
        %v633 = vadd.f32 %v553, %v602
        %v634 = vadd.f32 %v554, %v602
        %v635 = vadd.f32 %v555, %v602
        %v636 = vadd.f32 %v556, %v602
        %v637 = vadd.f32 %v557, %v607
        %v638 = vadd.f32 %v558, %v607
        %v639 = vadd.f32 %v559, %v607
        %v640 = vadd.f32 %v560, %v607
        %v641 = vtanh.pop %v609
        %v642 = vtanh.pop %v610
        %v643 = vtanh.pop %v611
        %v644 = vtanh.pop %v612
        %v645 = vtanh.pop %v613
        %v646 = vtanh.pop %v614
        %v647 = vtanh.pop %v615
        %v648 = vtanh.pop %v616
        %v649 = vtanh.pop %v617
        %v650 = vtanh.pop %v618
        %v651 = vtanh.pop %v619
        %v652 = vtanh.pop %v620
        %v653 = vtanh.pop %v621
        %v654 = vtanh.pop %v622
        %v655 = vtanh.pop %v623
        %v656 = vtanh.pop %v624
        %v657 = vtanh.pop %v625
        %v658 = vtanh.pop %v626
        %v659 = vtanh.pop %v627
        %v660 = vtanh.pop %v628
        %v661 = vtanh.pop %v629
        %v662 = vtanh.pop %v630
        %v663 = vtanh.pop %v631
        %v664 = vtanh.pop %v632
        %v665 = vtanh.pop %v633
        %v666 = vtanh.pop %v634
        %v667 = vtanh.pop %v635
        %v668 = vtanh.pop %v636
        %v669 = vtanh.pop %v637
        %v670 = vtanh.pop %v638
        %v671 = vtanh.pop %v639
        %v672 = vtanh.pop %v640
        %v673 = vld [vmem:[#allocation7] sm:$0xf]
        %v674 = vld [vmem:[#allocation7 + $0x4] sm:$0xf]
        %v675 = vld [vmem:[#allocation7 + $0x8] sm:$0xf]
        %v676 = vld [vmem:[#allocation7 + $0xc] sm:$0xf]
        %v677 = vld [vmem:[#allocation7 + $0x10] sm:$0xf]
        %v678 = vld [vmem:[#allocation7 + $0x14] sm:$0xf]
        %v679 = vld [vmem:[#allocation7 + $0x18] sm:$0xf]
        %v680 = vld [vmem:[#allocation7 + $0x1c] sm:$0xf]
        %v681 = vpack.c.bf16 %v645, %v641
        %v682 = vpack.c.bf16 %v646, %v642
        %v683 = vpack.c.bf16 %v647, %v643
        %v684 = vpack.c.bf16 %v648, %v644
        %v685 = vpack.c.bf16 %v653, %v649
        %v686 = vpack.c.bf16 %v654, %v650
        %v687 = vpack.c.bf16 %v655, %v651
        %v688 = vpack.c.bf16 %v656, %v652
        %v689 = vpack.c.bf16 %v661, %v657
        %v690 = vpack.c.bf16 %v662, %v658
        %v691 = vpack.c.bf16 %v663, %v659
        %v692 = vpack.c.bf16 %v664, %v660
        %v693 = vpack.c.bf16 %v669, %v665
        %v694 = vpack.c.bf16 %v670, %v666
        %v695 = vpack.c.bf16 %v671, %v667
        %v696 = vpack.c.bf16 %v672, %v668
        %s697 = scalar_lea.vmem [#allocation10], 64
        %v698 = vld [vmem:[%s697] sm:$0xff]
        %v699 = vld [vmem:[%s697 + $0x8] sm:$0xff]
        %v700 = vld [vmem:[%s697 + $0x10] sm:$0xff]
        %v701 = vld [vmem:[%s697 + $0x18] sm:$0xff]
        %v702 = vld [vmem:[%s697 + $0x20] sm:$0xff]
        %v703 = vld [vmem:[%s697 + $0x28] sm:$0xff]
        %v704 = vld [vmem:[%s697 + $0x30] sm:$0xff]
        %v705 = vld [vmem:[%s697 + $0x38] sm:$0xff]
        %707 = vset.pattern.permute.xlu0 0
        %708 = vperm.xlu0 %707, %v698
        %v709 = vpop.permute.xlu0 %708
        %712 = vset.pattern.permute.xlu0 0
        %713 = vperm.xlu0 %712, %v699
        %v714 = vpop.permute.xlu0 %713
        %717 = vset.pattern.permute.xlu0 0
        %718 = vperm.xlu0 %717, %v700
        %v719 = vpop.permute.xlu0 %718
        %722 = vset.pattern.permute.xlu0 0
        %723 = vperm.xlu0 %722, %v701
        %v724 = vpop.permute.xlu0 %723
        %727 = vset.pattern.permute.xlu0 0
        %728 = vperm.xlu0 %727, %v702
        %v729 = vpop.permute.xlu0 %728
        %732 = vset.pattern.permute.xlu0 0
        %733 = vperm.xlu0 %732, %v703
        %v734 = vpop.permute.xlu0 %733
        %737 = vset.pattern.permute.xlu0 0
        %738 = vperm.xlu0 %737, %v704
        %v739 = vpop.permute.xlu0 %738
        %742 = vset.pattern.permute.xlu0 0
        %743 = vperm.xlu0 %742, %v705
        %v744 = vpop.permute.xlu0 %743
        %v754 = vunpack.c.l.b16 %v673
        %v755 = vunpack.c.l.b16 %v674
        %v756 = vunpack.c.l.b16 %v675
        %v757 = vunpack.c.l.b16 %v676
        %v758 = vunpack.c.l.b16 %v677
        %v759 = vunpack.c.l.b16 %v678
        %v760 = vunpack.c.l.b16 %v679
        %v761 = vunpack.c.l.b16 %v680
        %v762 = vpack.c.b16 %v755, %v754
        %v763 = vpack.c.b16 %v757, %v756
        %v764 = vpack.c.b16 %v759, %v758
        %v765 = vpack.c.b16 %v761, %v760
        %vm766 = vcmask 523264
        %v768 = vsel %vm766, %v762, 0
        %v771 = vsel %vm766, %v763, 0
        %v774 = vsel %vm766, %v764, 0
        %v777 = vsel %vm766, %v765, 0
        %779 = vmatprep.subr.bf16.mxu0 %v682
        %780 = vmatpush1.bf16.msra.mxu0 %v681
        %781 = vmatprep.subr.bf16.mxu0 %v686
        %782 = vmatpush1.bf16.msra.mxu0 %v685
        %783 = vmatprep.subr.bf16.mxu0 %v690
        %784 = vmatpush1.bf16.msra.mxu0 %v689
        %785 = vmatprep.subr.bf16.mxu0 %v694
        %786 = vmatpush1.bf16.msra.mxu0 %v693
        %787 = vmatprep.subr.bf16.mxu0 0
        %788 = vmatpush1.bf16.msra.mxu0 0
        %789 = vmatprep.subr.bf16.mxu0 0
        %790 = vmatpush1.bf16.msra.mxu0 0
        %791 = vmatprep.subr.bf16.mxu0 0
        %792 = vmatpush1.bf16.msra.mxu0 0
        %793 = vmatprep.subr.bf16.mxu0 0
        %794 = vmatpush1.bf16.msra.mxu0 0
        %795 = vmatprep.subr.bf16.mxu0 0
        %796 = vmatpush1.bf16.msra.mxu0 0
        %797 = vmatprep.subr.bf16.mxu0 0
        %798 = vmatpush1.bf16.msra.mxu0 0
        %799 = vmatprep.subr.bf16.mxu0 0
        %800 = vmatpush1.bf16.msra.mxu0 0
        %801 = vmatprep.subr.bf16.mxu0 0
        %802 = vmatpush1.bf16.msra.mxu0 0
        %803 = vmatprep.subr.bf16.mxu0 0
        %804 = vmatpush1.bf16.msra.mxu0 0
        %805 = vmatprep.subr.bf16.mxu0 0
        %806 = vmatpush1.bf16.msra.mxu0 0
        %807 = vmatprep.subr.bf16.mxu0 0
        %808 = vmatpush1.bf16.msra.mxu0 0
        %809 = vmatprep.subr.bf16.mxu0 0
        %810 = vmatpush1.bf16.msra.mxu0 0
        %811 = vmatprep.mubr.bf16.mxu0 0
        %812 = vmatmul.mubr.bf16.gmra.mrb[0].mxu0 %v768
        %v813 = vpop.f32.mrb[0].mxu0
        %v814 = vadd.f32 %v709, %v813
        %v815 = vpop.f32.mrb[0].mxu0
        %v816 = vadd.f32 %v709, %v815
        %v817 = vpop.f32.mrb[0].mxu0
        %v818 = vadd.f32 %v714, %v817
        %v819 = vpop.f32.mrb[0].mxu0
        %v820 = vadd.f32 %v714, %v819
        %821 = vmatprep.mubr.bf16.mxu0 0
        %822 = vmatmul.mubr.bf16.gmra.mrb[0].mxu0 %v771
        %v823 = vpop.f32.mrb[0].mxu0
        %v824 = vadd.f32 %v719, %v823
        %v825 = vpop.f32.mrb[0].mxu0
        %v826 = vadd.f32 %v719, %v825
        %v827 = vpop.f32.mrb[0].mxu0
        %v828 = vadd.f32 %v724, %v827
        %v829 = vpop.f32.mrb[0].mxu0
        %v830 = vadd.f32 %v724, %v829
        %831 = vmatprep.mubr.bf16.mxu0 0
        %832 = vmatmul.mubr.bf16.gmra.mrb[0].mxu0 %v774
        %v833 = vpop.f32.mrb[0].mxu0
        %v834 = vadd.f32 %v729, %v833
        %v835 = vpop.f32.mrb[0].mxu0
        %v836 = vadd.f32 %v729, %v835
        %v837 = vpop.f32.mrb[0].mxu0
        %v838 = vadd.f32 %v734, %v837
        %v839 = vpop.f32.mrb[0].mxu0
        %v840 = vadd.f32 %v734, %v839
        %841 = vmatprep.mubr.bf16.mxu0 0
        %842 = vmatmul.mubr.bf16.gmra.mrb[0].mxu0 %v777
        %v843 = vpop.f32.mrb[0].mxu0
        %v844 = vadd.f32 %v739, %v843
        %v845 = vpop.f32.mrb[0].mxu0
        %v846 = vadd.f32 %v739, %v845
        %v847 = vpop.f32.mrb[0].mxu0
        %v848 = vadd.f32 %v744, %v847
        %v849 = vpop.f32.mrb[0].mxu0
        %v850 = vadd.f32 %v744, %v849
        %851 = vdwg.mxu0
        %852 = vmatprep.subr.bf16.mxu0 %v684
        %853 = vmatpush1.bf16.msra.mxu0 %v683
        %854 = vmatprep.subr.bf16.mxu0 %v688
        %855 = vmatpush1.bf16.msra.mxu0 %v687
        %856 = vmatprep.subr.bf16.mxu0 %v692
        %857 = vmatpush1.bf16.msra.mxu0 %v691
        %858 = vmatprep.subr.bf16.mxu0 %v696
        %859 = vmatpush1.bf16.msra.mxu0 %v695
        %860 = vmatprep.subr.bf16.mxu0 0
        %861 = vmatpush1.bf16.msra.mxu0 0
        %862 = vmatprep.subr.bf16.mxu0 0
        %863 = vmatpush1.bf16.msra.mxu0 0
        %864 = vmatprep.subr.bf16.mxu0 0
        %865 = vmatpush1.bf16.msra.mxu0 0
        %866 = vmatprep.subr.bf16.mxu0 0
        %867 = vmatpush1.bf16.msra.mxu0 0
        %868 = vmatprep.subr.bf16.mxu0 0
        %869 = vmatpush1.bf16.msra.mxu0 0
        %870 = vmatprep.subr.bf16.mxu0 0
        %871 = vmatpush1.bf16.msra.mxu0 0
        %872 = vmatprep.subr.bf16.mxu0 0
        %873 = vmatpush1.bf16.msra.mxu0 0
        %874 = vmatprep.subr.bf16.mxu0 0
        %875 = vmatpush1.bf16.msra.mxu0 0
        %876 = vmatprep.subr.bf16.mxu0 0
        %877 = vmatpush1.bf16.msra.mxu0 0
        %878 = vmatprep.subr.bf16.mxu0 0
        %879 = vmatpush1.bf16.msra.mxu0 0
        %880 = vmatprep.subr.bf16.mxu0 0
        %881 = vmatpush1.bf16.msra.mxu0 0
        %882 = vmatprep.subr.bf16.mxu0 0
        %883 = vmatpush1.bf16.msra.mxu0 0
        %884 = vmatprep.mubr.bf16.mxu0 0
        %885 = vmatmul.mubr.bf16.gmra.mrb[0].mxu0 %v768
        %v886 = vpop.f32.mrb[0].mxu0
        %v887 = vadd.f32 %v709, %v886
        %v888 = vpop.f32.mrb[0].mxu0
        %v889 = vadd.f32 %v709, %v888
        %v890 = vpop.f32.mrb[0].mxu0
        %v891 = vadd.f32 %v714, %v890
        %v892 = vpop.f32.mrb[0].mxu0
        %v893 = vadd.f32 %v714, %v892
        %894 = vmatprep.mubr.bf16.mxu0 0
        %895 = vmatmul.mubr.bf16.gmra.mrb[0].mxu0 %v771
        %v896 = vpop.f32.mrb[0].mxu0
        %v897 = vadd.f32 %v719, %v896
        %v898 = vpop.f32.mrb[0].mxu0
        %v899 = vadd.f32 %v719, %v898
        %v900 = vpop.f32.mrb[0].mxu0
        %v901 = vadd.f32 %v724, %v900
        %v902 = vpop.f32.mrb[0].mxu0
        %v903 = vadd.f32 %v724, %v902
        %904 = vmatprep.mubr.bf16.mxu0 0
        %905 = vmatmul.mubr.bf16.gmra.mrb[0].mxu0 %v774
        %v906 = vpop.f32.mrb[0].mxu0
        %v907 = vadd.f32 %v729, %v906
        %v908 = vpop.f32.mrb[0].mxu0
        %v909 = vadd.f32 %v729, %v908
        %v910 = vpop.f32.mrb[0].mxu0
        %v911 = vadd.f32 %v734, %v910
        %v912 = vpop.f32.mrb[0].mxu0
        %v913 = vadd.f32 %v734, %v912
        %914 = vmatprep.mubr.bf16.mxu0 0
        %915 = vmatmul.mubr.bf16.gmra.mrb[0].mxu0 %v777
        %v916 = vpop.f32.mrb[0].mxu0
        %v917 = vadd.f32 %v739, %v916
        %v918 = vpop.f32.mrb[0].mxu0
        %v919 = vadd.f32 %v739, %v918
        %v920 = vpop.f32.mrb[0].mxu0
        %v921 = vadd.f32 %v744, %v920
        %v922 = vpop.f32.mrb[0].mxu0
        %v923 = vadd.f32 %v744, %v922
        %924 = vdwg.mxu0
        %v925 = vtanh.pop %v814
        %v926 = vtanh.pop %v816
        %v927 = vtanh.pop %v887
        %v928 = vtanh.pop %v889
        %v929 = vtanh.pop %v818
        %v930 = vtanh.pop %v820
        %v931 = vtanh.pop %v891
        %v932 = vtanh.pop %v893
        %v933 = vtanh.pop %v824
        %v934 = vtanh.pop %v826
        %v935 = vtanh.pop %v897
        %v936 = vtanh.pop %v899
        %v937 = vtanh.pop %v828
        %v938 = vtanh.pop %v830
        %v939 = vtanh.pop %v901
        %v940 = vtanh.pop %v903
        %v941 = vtanh.pop %v834
        %v942 = vtanh.pop %v836
        %v943 = vtanh.pop %v907
        %v944 = vtanh.pop %v909
        %v945 = vtanh.pop %v838
        %v946 = vtanh.pop %v840
        %v947 = vtanh.pop %v911
        %v948 = vtanh.pop %v913
        %v949 = vtanh.pop %v844
        %v950 = vtanh.pop %v846
        %v951 = vtanh.pop %v917
        %v952 = vtanh.pop %v919
        %v953 = vtanh.pop %v848
        %v954 = vtanh.pop %v850
        %v955 = vtanh.pop %v921
        %v956 = vtanh.pop %v923
        %s957 = scalar_lea.vmem [#allocation7], 32
        %v958 = vld [vmem:[%s957] sm:$0xf]
        %v959 = vld [vmem:[%s957 + $0x4] sm:$0xf]
        %v960 = vld [vmem:[%s957 + $0x8] sm:$0xf]
        %v961 = vld [vmem:[%s957 + $0xc] sm:$0xf]
        %v962 = vld [vmem:[%s957 + $0x10] sm:$0xf]
        %v963 = vld [vmem:[%s957 + $0x14] sm:$0xf]
        %v964 = vld [vmem:[%s957 + $0x18] sm:$0xf]
        %v965 = vld [vmem:[%s957 + $0x1c] sm:$0xf]
        %v966 = vpack.c.bf16 %v929, %v925
        %v967 = vpack.c.bf16 %v930, %v926
        %v968 = vpack.c.bf16 %v931, %v927
        %v969 = vpack.c.bf16 %v932, %v928
        %v970 = vpack.c.bf16 %v937, %v933
        %v971 = vpack.c.bf16 %v938, %v934
        %v972 = vpack.c.bf16 %v939, %v935
        %v973 = vpack.c.bf16 %v940, %v936
        %v974 = vpack.c.bf16 %v945, %v941
        %v975 = vpack.c.bf16 %v946, %v942
        %v976 = vpack.c.bf16 %v947, %v943
        %v977 = vpack.c.bf16 %v948, %v944
        %v978 = vpack.c.bf16 %v953, %v949
        %v979 = vpack.c.bf16 %v954, %v950
        %v980 = vpack.c.bf16 %v955, %v951
        %v981 = vpack.c.bf16 %v956, %v952
        %s982 = scalar_lea.vmem [#allocation10], 128
        %v983 = vld [vmem:[%s982] sm:$0xff]
        %v984 = vld [vmem:[%s982 + $0x8] sm:$0xff]
        %v985 = vld [vmem:[%s982 + $0x10] sm:$0xff]
        %v986 = vld [vmem:[%s982 + $0x18] sm:$0xff]
        %v987 = vld [vmem:[%s982 + $0x20] sm:$0xff]
        %v988 = vld [vmem:[%s982 + $0x28] sm:$0xff]
        %v989 = vld [vmem:[%s982 + $0x30] sm:$0xff]
        %v990 = vld [vmem:[%s982 + $0x38] sm:$0xff]
        %992 = vset.pattern.permute.xlu0 0
        %993 = vperm.xlu0 %992, %v983
        %v994 = vpop.permute.xlu0 %993
        %997 = vset.pattern.permute.xlu0 0
        %998 = vperm.xlu0 %997, %v984
        %v999 = vpop.permute.xlu0 %998
        %1002 = vset.pattern.permute.xlu0 0
        %1003 = vperm.xlu0 %1002, %v985
        %v1004 = vpop.permute.xlu0 %1003
        %1007 = vset.pattern.permute.xlu0 0
        %1008 = vperm.xlu0 %1007, %v986
        %v1009 = vpop.permute.xlu0 %1008
        %1012 = vset.pattern.permute.xlu0 0
        %1013 = vperm.xlu0 %1012, %v987
        %v1014 = vpop.permute.xlu0 %1013
        %1017 = vset.pattern.permute.xlu0 0
        %1018 = vperm.xlu0 %1017, %v988
        %v1019 = vpop.permute.xlu0 %1018
        %1022 = vset.pattern.permute.xlu0 0
        %1023 = vperm.xlu0 %1022, %v989
        %v1024 = vpop.permute.xlu0 %1023
        %1027 = vset.pattern.permute.xlu0 0
        %1028 = vperm.xlu0 %1027, %v990
        %v1029 = vpop.permute.xlu0 %1028
        %v1039 = vunpack.c.l.b16 %v958
        %v1040 = vunpack.c.l.b16 %v959
        %v1041 = vunpack.c.l.b16 %v960
        %v1042 = vunpack.c.l.b16 %v961
        %v1043 = vunpack.c.l.b16 %v962
        %v1044 = vunpack.c.l.b16 %v963
        %v1045 = vunpack.c.l.b16 %v964
        %v1046 = vunpack.c.l.b16 %v965
        %v1047 = vpack.c.b16 %v1040, %v1039
        %v1048 = vpack.c.b16 %v1042, %v1041
        %v1049 = vpack.c.b16 %v1044, %v1043
        %v1050 = vpack.c.b16 %v1046, %v1045
        %v1052 = vsel %vm766, %v1047, 0
        %v1055 = vsel %vm766, %v1048, 0
        %v1058 = vsel %vm766, %v1049, 0
        %v1061 = vsel %vm766, %v1050, 0
        %1063 = vmatprep.subr.bf16.mxu0 %v967
        %1064 = vmatpush1.bf16.msra.mxu0 %v966
        %1065 = vmatprep.subr.bf16.mxu0 %v971
        %1066 = vmatpush1.bf16.msra.mxu0 %v970
        %1067 = vmatprep.subr.bf16.mxu0 %v975
        %1068 = vmatpush1.bf16.msra.mxu0 %v974
        %1069 = vmatprep.subr.bf16.mxu0 %v979
        %1070 = vmatpush1.bf16.msra.mxu0 %v978
        %1071 = vmatprep.subr.bf16.mxu0 0
        %1072 = vmatpush1.bf16.msra.mxu0 0
        %1073 = vmatprep.subr.bf16.mxu0 0
        %1074 = vmatpush1.bf16.msra.mxu0 0
        %1075 = vmatprep.subr.bf16.mxu0 0
        %1076 = vmatpush1.bf16.msra.mxu0 0
        %1077 = vmatprep.subr.bf16.mxu0 0
        %1078 = vmatpush1.bf16.msra.mxu0 0
        %1079 = vmatprep.subr.bf16.mxu0 0
        %1080 = vmatpush1.bf16.msra.mxu0 0
        %1081 = vmatprep.subr.bf16.mxu0 0
        %1082 = vmatpush1.bf16.msra.mxu0 0
        %1083 = vmatprep.subr.bf16.mxu0 0
        %1084 = vmatpush1.bf16.msra.mxu0 0
        %1085 = vmatprep.subr.bf16.mxu0 0
        %1086 = vmatpush1.bf16.msra.mxu0 0
        %1087 = vmatprep.subr.bf16.mxu0 0
        %1088 = vmatpush1.bf16.msra.mxu0 0
        %1089 = vmatprep.subr.bf16.mxu0 0
        %1090 = vmatpush1.bf16.msra.mxu0 0
        %1091 = vmatprep.subr.bf16.mxu0 0
        %1092 = vmatpush1.bf16.msra.mxu0 0
        %1093 = vmatprep.subr.bf16.mxu0 0
        %1094 = vmatpush1.bf16.msra.mxu0 0
        %1095 = vmatprep.mubr.bf16.mxu0 0
        %1096 = vmatmul.mubr.bf16.gmra.mrb[0].mxu0 %v1052
        %v1097 = vpop.f32.mrb[0].mxu0
        %v1098 = vadd.f32 %v994, %v1097
        %v1099 = vpop.f32.mrb[0].mxu0
        %v1100 = vadd.f32 %v994, %v1099
        %v1101 = vpop.f32.mrb[0].mxu0
        %v1102 = vadd.f32 %v999, %v1101
        %v1103 = vpop.f32.mrb[0].mxu0
        %v1104 = vadd.f32 %v999, %v1103
        %1105 = vmatprep.mubr.bf16.mxu0 0
        %1106 = vmatmul.mubr.bf16.gmra.mrb[0].mxu0 %v1055
        %v1107 = vpop.f32.mrb[0].mxu0
        %v1108 = vadd.f32 %v1004, %v1107
        %v1109 = vpop.f32.mrb[0].mxu0
        %v1110 = vadd.f32 %v1004, %v1109
        %v1111 = vpop.f32.mrb[0].mxu0
        %v1112 = vadd.f32 %v1009, %v1111
        %v1113 = vpop.f32.mrb[0].mxu0
        %v1114 = vadd.f32 %v1009, %v1113
        %1115 = vmatprep.mubr.bf16.mxu0 0
        %1116 = vmatmul.mubr.bf16.gmra.mrb[0].mxu0 %v1058
        %v1117 = vpop.f32.mrb[0].mxu0
        %v1118 = vadd.f32 %v1014, %v1117
        %v1119 = vpop.f32.mrb[0].mxu0
        %v1120 = vadd.f32 %v1014, %v1119
        %v1121 = vpop.f32.mrb[0].mxu0
        %v1122 = vadd.f32 %v1019, %v1121
        %v1123 = vpop.f32.mrb[0].mxu0
        %v1124 = vadd.f32 %v1019, %v1123
        %1125 = vmatprep.mubr.bf16.mxu0 0
        %1126 = vmatmul.mubr.bf16.gmra.mrb[0].mxu0 %v1061
        %v1127 = vpop.f32.mrb[0].mxu0
        %v1128 = vadd.f32 %v1024, %v1127
        %v1129 = vpop.f32.mrb[0].mxu0
        %v1130 = vadd.f32 %v1024, %v1129
        %v1131 = vpop.f32.mrb[0].mxu0
        %v1132 = vadd.f32 %v1029, %v1131
        %v1133 = vpop.f32.mrb[0].mxu0
        %v1134 = vadd.f32 %v1029, %v1133
        %1135 = vdwg.mxu0
        %1136 = vmatprep.subr.bf16.mxu0 %v969
        %1137 = vmatpush1.bf16.msra.mxu0 %v968
        %1138 = vmatprep.subr.bf16.mxu0 %v973
        %1139 = vmatpush1.bf16.msra.mxu0 %v972
        %1140 = vmatprep.subr.bf16.mxu0 %v977
        %1141 = vmatpush1.bf16.msra.mxu0 %v976
        %1142 = vmatprep.subr.bf16.mxu0 %v981
        %1143 = vmatpush1.bf16.msra.mxu0 %v980
        %1144 = vmatprep.subr.bf16.mxu0 0
        %1145 = vmatpush1.bf16.msra.mxu0 0
        %1146 = vmatprep.subr.bf16.mxu0 0
        %1147 = vmatpush1.bf16.msra.mxu0 0
        %1148 = vmatprep.subr.bf16.mxu0 0
        %1149 = vmatpush1.bf16.msra.mxu0 0
        %1150 = vmatprep.subr.bf16.mxu0 0
        %1151 = vmatpush1.bf16.msra.mxu0 0
        %1152 = vmatprep.subr.bf16.mxu0 0
        %1153 = vmatpush1.bf16.msra.mxu0 0
        %1154 = vmatprep.subr.bf16.mxu0 0
        %1155 = vmatpush1.bf16.msra.mxu0 0
        %1156 = vmatprep.subr.bf16.mxu0 0
        %1157 = vmatpush1.bf16.msra.mxu0 0
        %1158 = vmatprep.subr.bf16.mxu0 0
        %1159 = vmatpush1.bf16.msra.mxu0 0
        %1160 = vmatprep.subr.bf16.mxu0 0
        %1161 = vmatpush1.bf16.msra.mxu0 0
        %1162 = vmatprep.subr.bf16.mxu0 0
        %1163 = vmatpush1.bf16.msra.mxu0 0
        %1164 = vmatprep.subr.bf16.mxu0 0
        %1165 = vmatpush1.bf16.msra.mxu0 0
        %1166 = vmatprep.subr.bf16.mxu0 0
        %1167 = vmatpush1.bf16.msra.mxu0 0
        %1168 = vmatprep.mubr.bf16.mxu0 0
        %1169 = vmatmul.mubr.bf16.gmra.mrb[0].mxu0 %v1052
        %v1170 = vpop.f32.mrb[0].mxu0
        %v1171 = vadd.f32 %v994, %v1170
        %v1172 = vpop.f32.mrb[0].mxu0
        %v1173 = vadd.f32 %v994, %v1172
        %v1174 = vpop.f32.mrb[0].mxu0
        %v1175 = vadd.f32 %v999, %v1174
        %v1176 = vpop.f32.mrb[0].mxu0
        %v1177 = vadd.f32 %v999, %v1176
        %1178 = vmatprep.mubr.bf16.mxu0 0
        %1179 = vmatmul.mubr.bf16.gmra.mrb[0].mxu0 %v1055
        %v1180 = vpop.f32.mrb[0].mxu0
        %v1181 = vadd.f32 %v1004, %v1180
        %v1182 = vpop.f32.mrb[0].mxu0
        %v1183 = vadd.f32 %v1004, %v1182
        %v1184 = vpop.f32.mrb[0].mxu0
        %v1185 = vadd.f32 %v1009, %v1184
        %v1186 = vpop.f32.mrb[0].mxu0
        %v1187 = vadd.f32 %v1009, %v1186
        %1188 = vmatprep.mubr.bf16.mxu0 0
        %1189 = vmatmul.mubr.bf16.gmra.mrb[0].mxu0 %v1058
        %v1190 = vpop.f32.mrb[0].mxu0
        %v1191 = vadd.f32 %v1014, %v1190
        %v1192 = vpop.f32.mrb[0].mxu0
        %v1193 = vadd.f32 %v1014, %v1192
        %v1194 = vpop.f32.mrb[0].mxu0
        %v1195 = vadd.f32 %v1019, %v1194
        %v1196 = vpop.f32.mrb[0].mxu0
        %v1197 = vadd.f32 %v1019, %v1196
        %1198 = vmatprep.mubr.bf16.mxu0 0
        %1199 = vmatmul.mubr.bf16.gmra.mrb[0].mxu0 %v1061
        %v1200 = vpop.f32.mrb[0].mxu0
        %v1201 = vadd.f32 %v1024, %v1200
        %v1202 = vpop.f32.mrb[0].mxu0
        %v1203 = vadd.f32 %v1024, %v1202
        %v1204 = vpop.f32.mrb[0].mxu0
        %v1205 = vadd.f32 %v1029, %v1204
        %v1206 = vpop.f32.mrb[0].mxu0
        %v1207 = vadd.f32 %v1029, %v1206
        %1208 = vdwg.mxu0
        %v1209 = vtanh.pop %v1098
        %v1210 = vtanh.pop %v1100
        %v1211 = vtanh.pop %v1171
        %v1212 = vtanh.pop %v1173
        %v1213 = vtanh.pop %v1102
        %v1214 = vtanh.pop %v1104
        %v1215 = vtanh.pop %v1175
        %v1216 = vtanh.pop %v1177
        %v1217 = vtanh.pop %v1108
        %v1218 = vtanh.pop %v1110
        %v1219 = vtanh.pop %v1181
        %v1220 = vtanh.pop %v1183
        %v1221 = vtanh.pop %v1112
        %v1222 = vtanh.pop %v1114
        %v1223 = vtanh.pop %v1185
        %v1224 = vtanh.pop %v1187
        %v1225 = vtanh.pop %v1118
        %v1226 = vtanh.pop %v1120
        %v1227 = vtanh.pop %v1191
        %v1228 = vtanh.pop %v1193
        %v1229 = vtanh.pop %v1122
        %v1230 = vtanh.pop %v1124
        %v1231 = vtanh.pop %v1195
        %v1232 = vtanh.pop %v1197
        %v1233 = vtanh.pop %v1128
        %v1234 = vtanh.pop %v1130
        %v1235 = vtanh.pop %v1201
        %v1236 = vtanh.pop %v1203
        %v1237 = vtanh.pop %v1132
        %v1238 = vtanh.pop %v1134
        %v1239 = vtanh.pop %v1205
        %v1240 = vtanh.pop %v1207
        %s1241 = scalar_lea.vmem [#allocation7], 64
        %v1242 = vld [vmem:[%s1241] sm:$0xf]
        %v1243 = vld [vmem:[%s1241 + $0x4] sm:$0xf]
        %v1244 = vld [vmem:[%s1241 + $0x8] sm:$0xf]
        %v1245 = vld [vmem:[%s1241 + $0xc] sm:$0xf]
        %v1246 = vld [vmem:[%s1241 + $0x10] sm:$0xf]
        %v1247 = vld [vmem:[%s1241 + $0x14] sm:$0xf]
        %v1248 = vld [vmem:[%s1241 + $0x18] sm:$0xf]
        %v1249 = vld [vmem:[%s1241 + $0x1c] sm:$0xf]
        %v1250 = vpack.c.bf16 %v1213, %v1209
        %v1251 = vpack.c.bf16 %v1214, %v1210
        %v1252 = vpack.c.bf16 %v1215, %v1211
        %v1253 = vpack.c.bf16 %v1216, %v1212
        %v1254 = vpack.c.bf16 %v1221, %v1217
        %v1255 = vpack.c.bf16 %v1222, %v1218
        %v1256 = vpack.c.bf16 %v1223, %v1219
        %v1257 = vpack.c.bf16 %v1224, %v1220
        %v1258 = vpack.c.bf16 %v1229, %v1225
        %v1259 = vpack.c.bf16 %v1230, %v1226
        %v1260 = vpack.c.bf16 %v1231, %v1227
        %v1261 = vpack.c.bf16 %v1232, %v1228
        %v1262 = vpack.c.bf16 %v1237, %v1233
        %v1263 = vpack.c.bf16 %v1238, %v1234
        %v1264 = vpack.c.bf16 %v1239, %v1235
        %v1265 = vpack.c.bf16 %v1240, %v1236
        %s1266 = scalar_lea.vmem [#allocation10], 192
        %v1267 = vld [vmem:[%s1266] sm:$0xff]
        %v1268 = vld [vmem:[%s1266 + $0x8] sm:$0xff]
        %v1269 = vld [vmem:[%s1266 + $0x10] sm:$0xff]
        %v1270 = vld [vmem:[%s1266 + $0x18] sm:$0xff]
        %v1271 = vld [vmem:[%s1266 + $0x20] sm:$0xff]
        %v1272 = vld [vmem:[%s1266 + $0x28] sm:$0xff]
        %v1273 = vld [vmem:[%s1266 + $0x30] sm:$0xff]
        %v1274 = vld [vmem:[%s1266 + $0x38] sm:$0xff]
        %1276 = vset.pattern.permute.xlu0 0
        %1277 = vperm.xlu0 %1276, %v1267
        %v1278 = vpop.permute.xlu0 %1277
        %1281 = vset.pattern.permute.xlu0 0
        %1282 = vperm.xlu0 %1281, %v1268
        %v1283 = vpop.permute.xlu0 %1282
        %1286 = vset.pattern.permute.xlu0 0
        %1287 = vperm.xlu0 %1286, %v1269
        %v1288 = vpop.permute.xlu0 %1287
        %1291 = vset.pattern.permute.xlu0 0
        %1292 = vperm.xlu0 %1291, %v1270
        %v1293 = vpop.permute.xlu0 %1292
        %1296 = vset.pattern.permute.xlu0 0
        %1297 = vperm.xlu0 %1296, %v1271
        %v1298 = vpop.permute.xlu0 %1297
        %1301 = vset.pattern.permute.xlu0 0
        %1302 = vperm.xlu0 %1301, %v1272
        %v1303 = vpop.permute.xlu0 %1302
        %1306 = vset.pattern.permute.xlu0 0
        %1307 = vperm.xlu0 %1306, %v1273
        %v1308 = vpop.permute.xlu0 %1307
        %1311 = vset.pattern.permute.xlu0 0
        %1312 = vperm.xlu0 %1311, %v1274
        %v1313 = vpop.permute.xlu0 %1312
        %v1323 = vunpack.c.l.b16 %v1242
        %v1324 = vunpack.c.l.b16 %v1243
        %v1325 = vunpack.c.l.b16 %v1244
        %v1326 = vunpack.c.l.b16 %v1245
        %v1327 = vunpack.c.l.b16 %v1246
        %v1328 = vunpack.c.l.b16 %v1247
        %v1329 = vunpack.c.l.b16 %v1248
        %v1330 = vunpack.c.l.b16 %v1249
        %v1331 = vpack.c.b16 %v1324, %v1323
        %v1332 = vpack.c.b16 %v1326, %v1325
        %v1333 = vpack.c.b16 %v1328, %v1327
        %v1334 = vpack.c.b16 %v1330, %v1329
        %v1336 = vsel %vm766, %v1331, 0
        %v1339 = vsel %vm766, %v1332, 0
        %v1342 = vsel %vm766, %v1333, 0
        %v1345 = vsel %vm766, %v1334, 0
        %1347 = vmatprep.subr.bf16.mxu0 %v1251
        %1348 = vmatpush1.bf16.msra.mxu0 %v1250
        %1349 = vmatprep.subr.bf16.mxu0 %v1255
        %1350 = vmatpush1.bf16.msra.mxu0 %v1254
        %1351 = vmatprep.subr.bf16.mxu0 %v1259
        %1352 = vmatpush1.bf16.msra.mxu0 %v1258
        %1353 = vmatprep.subr.bf16.mxu0 %v1263
        %1354 = vmatpush1.bf16.msra.mxu0 %v1262
        %1355 = vmatprep.subr.bf16.mxu0 0
        %1356 = vmatpush1.bf16.msra.mxu0 0
        %1357 = vmatprep.subr.bf16.mxu0 0
        %1358 = vmatpush1.bf16.msra.mxu0 0
        %1359 = vmatprep.subr.bf16.mxu0 0
        %1360 = vmatpush1.bf16.msra.mxu0 0
        %1361 = vmatprep.subr.bf16.mxu0 0
        %1362 = vmatpush1.bf16.msra.mxu0 0
        %1363 = vmatprep.subr.bf16.mxu0 0
        %1364 = vmatpush1.bf16.msra.mxu0 0
        %1365 = vmatprep.subr.bf16.mxu0 0
        %1366 = vmatpush1.bf16.msra.mxu0 0
        %1367 = vmatprep.subr.bf16.mxu0 0
        %1368 = vmatpush1.bf16.msra.mxu0 0
        %1369 = vmatprep.subr.bf16.mxu0 0
        %1370 = vmatpush1.bf16.msra.mxu0 0
        %1371 = vmatprep.subr.bf16.mxu0 0
        %1372 = vmatpush1.bf16.msra.mxu0 0
        %1373 = vmatprep.subr.bf16.mxu0 0
        %1374 = vmatpush1.bf16.msra.mxu0 0
        %1375 = vmatprep.subr.bf16.mxu0 0
        %1376 = vmatpush1.bf16.msra.mxu0 0
        %1377 = vmatprep.subr.bf16.mxu0 0
        %1378 = vmatpush1.bf16.msra.mxu0 0
        %1379 = vmatprep.mubr.bf16.mxu0 0
        %1380 = vmatmul.mubr.bf16.gmra.mrb[0].mxu0 %v1336
        %v1381 = vpop.f32.mrb[0].mxu0
        %v1382 = vadd.f32 %v1278, %v1381
        %v1383 = vpop.f32.mrb[0].mxu0
        %v1384 = vadd.f32 %v1278, %v1383
        %v1385 = vpop.f32.mrb[0].mxu0
        %v1386 = vadd.f32 %v1283, %v1385
        %v1387 = vpop.f32.mrb[0].mxu0
        %v1388 = vadd.f32 %v1283, %v1387
        %1389 = vmatprep.mubr.bf16.mxu0 0
        %1390 = vmatmul.mubr.bf16.gmra.mrb[0].mxu0 %v1339
        %v1391 = vpop.f32.mrb[0].mxu0
        %v1392 = vadd.f32 %v1288, %v1391
        %v1393 = vpop.f32.mrb[0].mxu0
        %v1394 = vadd.f32 %v1288, %v1393
        %v1395 = vpop.f32.mrb[0].mxu0
        %v1396 = vadd.f32 %v1293, %v1395
        %v1397 = vpop.f32.mrb[0].mxu0
        %v1398 = vadd.f32 %v1293, %v1397
        %1399 = vmatprep.mubr.bf16.mxu0 0
        %1400 = vmatmul.mubr.bf16.gmra.mrb[0].mxu0 %v1342
        %v1401 = vpop.f32.mrb[0].mxu0
        %v1402 = vadd.f32 %v1298, %v1401
        %v1403 = vpop.f32.mrb[0].mxu0
        %v1404 = vadd.f32 %v1298, %v1403
        %v1405 = vpop.f32.mrb[0].mxu0
        %v1406 = vadd.f32 %v1303, %v1405
        %v1407 = vpop.f32.mrb[0].mxu0
        %v1408 = vadd.f32 %v1303, %v1407
        %1409 = vmatprep.mubr.bf16.mxu0 0
        %1410 = vmatmul.mubr.bf16.gmra.mrb[0].mxu0 %v1345
        %v1411 = vpop.f32.mrb[0].mxu0
        %v1412 = vadd.f32 %v1308, %v1411
        %v1413 = vpop.f32.mrb[0].mxu0
        %v1414 = vadd.f32 %v1308, %v1413
        %v1415 = vpop.f32.mrb[0].mxu0
        %v1416 = vadd.f32 %v1313, %v1415
        %v1417 = vpop.f32.mrb[0].mxu0
        %v1418 = vadd.f32 %v1313, %v1417
        %1419 = vdwg.mxu0
        %1420 = vmatprep.subr.bf16.mxu0 %v1253
        %1421 = vmatpush1.bf16.msra.mxu0 %v1252
        %1422 = vmatprep.subr.bf16.mxu0 %v1257
        %1423 = vmatpush1.bf16.msra.mxu0 %v1256
        %1424 = vmatprep.subr.bf16.mxu0 %v1261
        %1425 = vmatpush1.bf16.msra.mxu0 %v1260
        %1426 = vmatprep.subr.bf16.mxu0 %v1265
        %1427 = vmatpush1.bf16.msra.mxu0 %v1264
        %1428 = vmatprep.subr.bf16.mxu0 0
        %1429 = vmatpush1.bf16.msra.mxu0 0
        %1430 = vmatprep.subr.bf16.mxu0 0
        %1431 = vmatpush1.bf16.msra.mxu0 0
        %1432 = vmatprep.subr.bf16.mxu0 0
        %1433 = vmatpush1.bf16.msra.mxu0 0
        %1434 = vmatprep.subr.bf16.mxu0 0
        %1435 = vmatpush1.bf16.msra.mxu0 0
        %1436 = vmatprep.subr.bf16.mxu0 0
        %1437 = vmatpush1.bf16.msra.mxu0 0
        %1438 = vmatprep.subr.bf16.mxu0 0
        %1439 = vmatpush1.bf16.msra.mxu0 0
        %1440 = vmatprep.subr.bf16.mxu0 0
        %1441 = vmatpush1.bf16.msra.mxu0 0
        %1442 = vmatprep.subr.bf16.mxu0 0
        %1443 = vmatpush1.bf16.msra.mxu0 0
        %1444 = vmatprep.subr.bf16.mxu0 0
        %1445 = vmatpush1.bf16.msra.mxu0 0
        %1446 = vmatprep.subr.bf16.mxu0 0
        %1447 = vmatpush1.bf16.msra.mxu0 0
        %1448 = vmatprep.subr.bf16.mxu0 0
        %1449 = vmatpush1.bf16.msra.mxu0 0
        %1450 = vmatprep.subr.bf16.mxu0 0
        %1451 = vmatpush1.bf16.msra.mxu0 0
        %1452 = vmatprep.mubr.bf16.mxu0 0
        %1453 = vmatmul.mubr.bf16.gmra.mrb[0].mxu0 %v1336
        %v1454 = vpop.f32.mrb[0].mxu0
        %v1455 = vadd.f32 %v1278, %v1454
        %v1456 = vpop.f32.mrb[0].mxu0
        %v1457 = vadd.f32 %v1278, %v1456
        %v1458 = vpop.f32.mrb[0].mxu0
        %v1459 = vadd.f32 %v1283, %v1458
        %v1460 = vpop.f32.mrb[0].mxu0
        %v1461 = vadd.f32 %v1283, %v1460
        %1462 = vmatprep.mubr.bf16.mxu0 0
        %1463 = vmatmul.mubr.bf16.gmra.mrb[0].mxu0 %v1339
        %v1464 = vpop.f32.mrb[0].mxu0
        %v1465 = vadd.f32 %v1288, %v1464
        %v1466 = vpop.f32.mrb[0].mxu0
        %v1467 = vadd.f32 %v1288, %v1466
        %v1468 = vpop.f32.mrb[0].mxu0
        %v1469 = vadd.f32 %v1293, %v1468
        %v1470 = vpop.f32.mrb[0].mxu0
        %v1471 = vadd.f32 %v1293, %v1470
        %1472 = vmatprep.mubr.bf16.mxu0 0
        %1473 = vmatmul.mubr.bf16.gmra.mrb[0].mxu0 %v1342
        %v1474 = vpop.f32.mrb[0].mxu0
        %v1475 = vadd.f32 %v1298, %v1474
        %v1476 = vpop.f32.mrb[0].mxu0
        %v1477 = vadd.f32 %v1298, %v1476
        %v1478 = vpop.f32.mrb[0].mxu0
        %v1479 = vadd.f32 %v1303, %v1478
        %v1480 = vpop.f32.mrb[0].mxu0
        %v1481 = vadd.f32 %v1303, %v1480
        %1482 = vmatprep.mubr.bf16.mxu0 0
        %1483 = vmatmul.mubr.bf16.gmra.mrb[0].mxu0 %v1345
        %v1484 = vpop.f32.mrb[0].mxu0
        %v1485 = vadd.f32 %v1308, %v1484
        %v1486 = vpop.f32.mrb[0].mxu0
        %v1487 = vadd.f32 %v1308, %v1486
        %v1488 = vpop.f32.mrb[0].mxu0
        %v1489 = vadd.f32 %v1313, %v1488
        %v1490 = vpop.f32.mrb[0].mxu0
        %v1491 = vadd.f32 %v1313, %v1490
        %1492 = vdwg.mxu0
        %v1493 = vtanh.pop %v1382
        %v1494 = vtanh.pop %v1384
        %v1495 = vtanh.pop %v1455
        %v1496 = vtanh.pop %v1457
        %v1497 = vtanh.pop %v1386
        %v1498 = vtanh.pop %v1388
        %v1499 = vtanh.pop %v1459
        %v1500 = vtanh.pop %v1461
        %v1501 = vtanh.pop %v1392
        %v1502 = vtanh.pop %v1394
        %v1503 = vtanh.pop %v1465
        %v1504 = vtanh.pop %v1467
        %v1505 = vtanh.pop %v1396
        %v1506 = vtanh.pop %v1398
        %v1507 = vtanh.pop %v1469
        %v1508 = vtanh.pop %v1471
        %v1509 = vtanh.pop %v1402
        %v1510 = vtanh.pop %v1404
        %v1511 = vtanh.pop %v1475
        %v1512 = vtanh.pop %v1477
        %v1513 = vtanh.pop %v1406
        %v1514 = vtanh.pop %v1408
        %v1515 = vtanh.pop %v1479
        %v1516 = vtanh.pop %v1481
        %v1517 = vtanh.pop %v1412
        %v1518 = vtanh.pop %v1414
        %v1519 = vtanh.pop %v1485
        %v1520 = vtanh.pop %v1487
        %v1521 = vtanh.pop %v1416
        %v1522 = vtanh.pop %v1418
        %v1523 = vtanh.pop %v1489
        %v1524 = vtanh.pop %v1491
        %s1525 = scalar_lea.vmem [#allocation7], 96
        %v1526 = vld [vmem:[%s1525] sm:$0xf]
        %v1527 = vld [vmem:[%s1525 + $0x4] sm:$0xf]
        %v1528 = vld [vmem:[%s1525 + $0x8] sm:$0xf]
        %v1529 = vld [vmem:[%s1525 + $0xc] sm:$0xf]
        %v1530 = vld [vmem:[%s1525 + $0x10] sm:$0xf]
        %v1531 = vld [vmem:[%s1525 + $0x14] sm:$0xf]
        %v1532 = vld [vmem:[%s1525 + $0x18] sm:$0xf]
        %v1533 = vld [vmem:[%s1525 + $0x1c] sm:$0xf]
        %v1534 = vpack.c.bf16 %v1497, %v1493
        %v1535 = vpack.c.bf16 %v1498, %v1494
        %v1536 = vpack.c.bf16 %v1499, %v1495
        %v1537 = vpack.c.bf16 %v1500, %v1496
        %v1538 = vpack.c.bf16 %v1505, %v1501
        %v1539 = vpack.c.bf16 %v1506, %v1502
        %v1540 = vpack.c.bf16 %v1507, %v1503
        %v1541 = vpack.c.bf16 %v1508, %v1504
        %v1542 = vpack.c.bf16 %v1513, %v1509
        %v1543 = vpack.c.bf16 %v1514, %v1510
        %v1544 = vpack.c.bf16 %v1515, %v1511
        %v1545 = vpack.c.bf16 %v1516, %v1512
        %v1546 = vpack.c.bf16 %v1521, %v1517
        %v1547 = vpack.c.bf16 %v1522, %v1518
        %v1548 = vpack.c.bf16 %v1523, %v1519
        %v1549 = vpack.c.bf16 %v1524, %v1520
        %s1550 = scalar_lea.vmem [#allocation10], 256
        %v1551 = vld [vmem:[%s1550] sm:$0xff]
        %v1552 = vld [vmem:[%s1550 + $0x8] sm:$0xff]
        %v1553 = vld [vmem:[%s1550 + $0x10] sm:$0xff]
        %v1554 = vld [vmem:[%s1550 + $0x18] sm:$0xff]
        %v1555 = vld [vmem:[%s1550 + $0x20] sm:$0xff]
        %v1556 = vld [vmem:[%s1550 + $0x28] sm:$0xff]
        %v1557 = vld [vmem:[%s1550 + $0x30] sm:$0xff]
        %v1558 = vld [vmem:[%s1550 + $0x38] sm:$0xff]
        %1560 = vset.pattern.permute.xlu0 0
        %1561 = vperm.xlu0 %1560, %v1551
        %v1562 = vpop.permute.xlu0 %1561
        %1565 = vset.pattern.permute.xlu0 0
        %1566 = vperm.xlu0 %1565, %v1552
        %v1567 = vpop.permute.xlu0 %1566
        %1570 = vset.pattern.permute.xlu0 0
        %1571 = vperm.xlu0 %1570, %v1553
        %v1572 = vpop.permute.xlu0 %1571
        %1575 = vset.pattern.permute.xlu0 0
        %1576 = vperm.xlu0 %1575, %v1554
        %v1577 = vpop.permute.xlu0 %1576
        %1580 = vset.pattern.permute.xlu0 0
        %1581 = vperm.xlu0 %1580, %v1555
        %v1582 = vpop.permute.xlu0 %1581
        %1585 = vset.pattern.permute.xlu0 0
        %1586 = vperm.xlu0 %1585, %v1556
        %v1587 = vpop.permute.xlu0 %1586
        %1590 = vset.pattern.permute.xlu0 0
        %1591 = vperm.xlu0 %1590, %v1557
        %v1592 = vpop.permute.xlu0 %1591
        %1595 = vset.pattern.permute.xlu0 0
        %1596 = vperm.xlu0 %1595, %v1558
        %v1597 = vpop.permute.xlu0 %1596
        %v1607 = vunpack.c.l.b16 %v1526
        %v1608 = vunpack.c.l.b16 %v1527
        %v1609 = vunpack.c.l.b16 %v1528
        %v1610 = vunpack.c.l.b16 %v1529
        %v1611 = vunpack.c.l.b16 %v1530
        %v1612 = vunpack.c.l.b16 %v1531
        %v1613 = vunpack.c.l.b16 %v1532
        %v1614 = vunpack.c.l.b16 %v1533
        %v1615 = vpack.c.b16 %v1608, %v1607
        %v1616 = vpack.c.b16 %v1610, %v1609
        %v1617 = vpack.c.b16 %v1612, %v1611
        %v1618 = vpack.c.b16 %v1614, %v1613
        %v1620 = vsel %vm766, %v1615, 0
        %v1623 = vsel %vm766, %v1616, 0
        %v1626 = vsel %vm766, %v1617, 0
        %v1629 = vsel %vm766, %v1618, 0
        %1631 = vmatprep.subr.bf16.mxu0 %v1535
        %1632 = vmatpush1.bf16.msra.mxu0 %v1534
        %1633 = vmatprep.subr.bf16.mxu0 %v1539
        %1634 = vmatpush1.bf16.msra.mxu0 %v1538
        %1635 = vmatprep.subr.bf16.mxu0 %v1543
        %1636 = vmatpush1.bf16.msra.mxu0 %v1542
        %1637 = vmatprep.subr.bf16.mxu0 %v1547
        %1638 = vmatpush1.bf16.msra.mxu0 %v1546
        %1639 = vmatprep.subr.bf16.mxu0 0
        %1640 = vmatpush1.bf16.msra.mxu0 0
        %1641 = vmatprep.subr.bf16.mxu0 0
        %1642 = vmatpush1.bf16.msra.mxu0 0
        %1643 = vmatprep.subr.bf16.mxu0 0
        %1644 = vmatpush1.bf16.msra.mxu0 0
        %1645 = vmatprep.subr.bf16.mxu0 0
        %1646 = vmatpush1.bf16.msra.mxu0 0
        %1647 = vmatprep.subr.bf16.mxu0 0
        %1648 = vmatpush1.bf16.msra.mxu0 0
        %1649 = vmatprep.subr.bf16.mxu0 0
        %1650 = vmatpush1.bf16.msra.mxu0 0
        %1651 = vmatprep.subr.bf16.mxu0 0
        %1652 = vmatpush1.bf16.msra.mxu0 0
        %1653 = vmatprep.subr.bf16.mxu0 0
        %1654 = vmatpush1.bf16.msra.mxu0 0
        %1655 = vmatprep.subr.bf16.mxu0 0
        %1656 = vmatpush1.bf16.msra.mxu0 0
        %1657 = vmatprep.subr.bf16.mxu0 0
        %1658 = vmatpush1.bf16.msra.mxu0 0
        %1659 = vmatprep.subr.bf16.mxu0 0
        %1660 = vmatpush1.bf16.msra.mxu0 0
        %1661 = vmatprep.subr.bf16.mxu0 0
        %1662 = vmatpush1.bf16.msra.mxu0 0
        %1663 = vmatprep.mubr.bf16.mxu0 0
        %1664 = vmatmul.mubr.bf16.gmra.mrb[0].mxu0 %v1620
        %v1665 = vpop.f32.mrb[0].mxu0
        %v1666 = vadd.f32 %v1562, %v1665
        %v1667 = vpop.f32.mrb[0].mxu0
        %v1668 = vadd.f32 %v1562, %v1667
        %v1669 = vpop.f32.mrb[0].mxu0
        %v1670 = vadd.f32 %v1567, %v1669
        %v1671 = vpop.f32.mrb[0].mxu0
        %v1672 = vadd.f32 %v1567, %v1671
        %1673 = vmatprep.mubr.bf16.mxu0 0
        %1674 = vmatmul.mubr.bf16.gmra.mrb[0].mxu0 %v1623
        %v1675 = vpop.f32.mrb[0].mxu0
        %v1676 = vadd.f32 %v1572, %v1675
        %v1677 = vpop.f32.mrb[0].mxu0
        %v1678 = vadd.f32 %v1572, %v1677
        %v1679 = vpop.f32.mrb[0].mxu0
        %v1680 = vadd.f32 %v1577, %v1679
        %v1681 = vpop.f32.mrb[0].mxu0
        %v1682 = vadd.f32 %v1577, %v1681
        %1683 = vmatprep.mubr.bf16.mxu0 0
        %1684 = vmatmul.mubr.bf16.gmra.mrb[0].mxu0 %v1626
        %v1685 = vpop.f32.mrb[0].mxu0
        %v1686 = vadd.f32 %v1582, %v1685
        %v1687 = vpop.f32.mrb[0].mxu0
        %v1688 = vadd.f32 %v1582, %v1687
        %v1689 = vpop.f32.mrb[0].mxu0
        %v1690 = vadd.f32 %v1587, %v1689
        %v1691 = vpop.f32.mrb[0].mxu0
        %v1692 = vadd.f32 %v1587, %v1691
        %1693 = vmatprep.mubr.bf16.mxu0 0
        %1694 = vmatmul.mubr.bf16.gmra.mrb[0].mxu0 %v1629
        %v1695 = vpop.f32.mrb[0].mxu0
        %v1696 = vadd.f32 %v1592, %v1695
        %v1697 = vpop.f32.mrb[0].mxu0
        %v1698 = vadd.f32 %v1592, %v1697
        %v1699 = vpop.f32.mrb[0].mxu0
        %v1700 = vadd.f32 %v1597, %v1699
        %v1701 = vpop.f32.mrb[0].mxu0
        %v1702 = vadd.f32 %v1597, %v1701
        %1703 = vdwg.mxu0
        %1704 = vmatprep.subr.bf16.mxu0 %v1537
        %1705 = vmatpush1.bf16.msra.mxu0 %v1536
        %1706 = vmatprep.subr.bf16.mxu0 %v1541
        %1707 = vmatpush1.bf16.msra.mxu0 %v1540
        %1708 = vmatprep.subr.bf16.mxu0 %v1545
        %1709 = vmatpush1.bf16.msra.mxu0 %v1544
        %1710 = vmatprep.subr.bf16.mxu0 %v1549
        %1711 = vmatpush1.bf16.msra.mxu0 %v1548
        %1712 = vmatprep.subr.bf16.mxu0 0
        %1713 = vmatpush1.bf16.msra.mxu0 0
        %1714 = vmatprep.subr.bf16.mxu0 0
        %1715 = vmatpush1.bf16.msra.mxu0 0
        %1716 = vmatprep.subr.bf16.mxu0 0
        %1717 = vmatpush1.bf16.msra.mxu0 0
        %1718 = vmatprep.subr.bf16.mxu0 0
        %1719 = vmatpush1.bf16.msra.mxu0 0
        %1720 = vmatprep.subr.bf16.mxu0 0
        %1721 = vmatpush1.bf16.msra.mxu0 0
        %1722 = vmatprep.subr.bf16.mxu0 0
        %1723 = vmatpush1.bf16.msra.mxu0 0
        %1724 = vmatprep.subr.bf16.mxu0 0
        %1725 = vmatpush1.bf16.msra.mxu0 0
        %1726 = vmatprep.subr.bf16.mxu0 0
        %1727 = vmatpush1.bf16.msra.mxu0 0
        %1728 = vmatprep.subr.bf16.mxu0 0
        %1729 = vmatpush1.bf16.msra.mxu0 0
        %1730 = vmatprep.subr.bf16.mxu0 0
        %1731 = vmatpush1.bf16.msra.mxu0 0
        %1732 = vmatprep.subr.bf16.mxu0 0
        %1733 = vmatpush1.bf16.msra.mxu0 0
        %1734 = vmatprep.subr.bf16.mxu0 0
        %1735 = vmatpush1.bf16.msra.mxu0 0
        %1736 = vmatprep.mubr.bf16.mxu0 0
        %1737 = vmatmul.mubr.bf16.gmra.mrb[0].mxu0 %v1620
        %v1738 = vpop.f32.mrb[0].mxu0
        %v1739 = vadd.f32 %v1562, %v1738
        %v1740 = vpop.f32.mrb[0].mxu0
        %v1741 = vadd.f32 %v1562, %v1740
        %v1742 = vpop.f32.mrb[0].mxu0
        %v1743 = vadd.f32 %v1567, %v1742
        %v1744 = vpop.f32.mrb[0].mxu0
        %v1745 = vadd.f32 %v1567, %v1744
        %1746 = vmatprep.mubr.bf16.mxu0 0
        %1747 = vmatmul.mubr.bf16.gmra.mrb[0].mxu0 %v1623
        %v1748 = vpop.f32.mrb[0].mxu0
        %v1749 = vadd.f32 %v1572, %v1748
        %v1750 = vpop.f32.mrb[0].mxu0
        %v1751 = vadd.f32 %v1572, %v1750
        %v1752 = vpop.f32.mrb[0].mxu0
        %v1753 = vadd.f32 %v1577, %v1752
        %v1754 = vpop.f32.mrb[0].mxu0
        %v1755 = vadd.f32 %v1577, %v1754
        %1756 = vmatprep.mubr.bf16.mxu0 0
        %1757 = vmatmul.mubr.bf16.gmra.mrb[0].mxu0 %v1626
        %v1758 = vpop.f32.mrb[0].mxu0
        %v1759 = vadd.f32 %v1582, %v1758
        %v1760 = vpop.f32.mrb[0].mxu0
        %v1761 = vadd.f32 %v1582, %v1760
        %v1762 = vpop.f32.mrb[0].mxu0
        %v1763 = vadd.f32 %v1587, %v1762
        %v1764 = vpop.f32.mrb[0].mxu0
        %v1765 = vadd.f32 %v1587, %v1764
        %1766 = vmatprep.mubr.bf16.mxu0 0
        %1767 = vmatmul.mubr.bf16.gmra.mrb[0].mxu0 %v1629
        %v1768 = vpop.f32.mrb[0].mxu0
        %v1769 = vadd.f32 %v1592, %v1768
        %v1770 = vpop.f32.mrb[0].mxu0
        %v1771 = vadd.f32 %v1592, %v1770
        %v1772 = vpop.f32.mrb[0].mxu0
        %v1773 = vadd.f32 %v1597, %v1772
        %v1774 = vpop.f32.mrb[0].mxu0
        %v1775 = vadd.f32 %v1597, %v1774
        %1776 = vdwg.mxu0
        %v1777 = vtanh.pop %v1666
        %v1778 = vtanh.pop %v1668
        %v1779 = vtanh.pop %v1739
        %v1780 = vtanh.pop %v1741
        %v1781 = vtanh.pop %v1670
        %v1782 = vtanh.pop %v1672
        %v1783 = vtanh.pop %v1743
        %v1784 = vtanh.pop %v1745
        %v1785 = vtanh.pop %v1676
        %v1786 = vtanh.pop %v1678
        %v1787 = vtanh.pop %v1749
        %v1788 = vtanh.pop %v1751
        %v1789 = vtanh.pop %v1680
        %v1790 = vtanh.pop %v1682
        %v1791 = vtanh.pop %v1753
        %v1792 = vtanh.pop %v1755
        %v1793 = vtanh.pop %v1686
        %v1794 = vtanh.pop %v1688
        %v1795 = vtanh.pop %v1759
        %v1796 = vtanh.pop %v1761
        %v1797 = vtanh.pop %v1690
        %v1798 = vtanh.pop %v1692
        %v1799 = vtanh.pop %v1763
        %v1800 = vtanh.pop %v1765
        %v1801 = vtanh.pop %v1696
        %v1802 = vtanh.pop %v1698
        %v1803 = vtanh.pop %v1769
        %v1804 = vtanh.pop %v1771
        %v1805 = vtanh.pop %v1700
        %v1806 = vtanh.pop %v1702
        %v1807 = vtanh.pop %v1773
        %v1808 = vtanh.pop %v1775
        %v1809 = vld [vmem:[#allocation8] sm:$0xf]
        %v1810 = vpack.c.bf16 %v1781, %v1777
        %v1811 = vpack.c.bf16 %v1782, %v1778
        %v1812 = vpack.c.bf16 %v1783, %v1779
        %v1813 = vpack.c.bf16 %v1784, %v1780
        %v1814 = vpack.c.bf16 %v1789, %v1785
        %v1815 = vpack.c.bf16 %v1790, %v1786
        %v1816 = vpack.c.bf16 %v1791, %v1787
        %v1817 = vpack.c.bf16 %v1792, %v1788
        %v1818 = vpack.c.bf16 %v1797, %v1793
        %v1819 = vpack.c.bf16 %v1798, %v1794
        %v1820 = vpack.c.bf16 %v1799, %v1795
        %v1821 = vpack.c.bf16 %v1800, %v1796
        %v1822 = vpack.c.bf16 %v1805, %v1801
        %v1823 = vpack.c.bf16 %v1806, %v1802
        %v1824 = vpack.c.bf16 %v1807, %v1803
        %v1825 = vpack.c.bf16 %v1808, %v1804
        %v1826 = vld [vmem:[#allocation11] sm:$0xff]
        %1828 = vset.pattern.permute.xlu0 0
        %1829 = vperm.xlu0 %1828, %v1826
        %v1830 = vpop.permute.xlu0 %1829
        %v1833 = vsel %vm766, %v1809, 0
        %1835 = vmatprep.subr.bf16.mxu0 %v1811
        %1836 = vmatpush1.bf16.msra.mxu0 %v1810
        %1837 = vmatprep.subr.bf16.mxu0 %v1815
        %1838 = vmatpush1.bf16.msra.mxu0 %v1814
        %1839 = vmatprep.subr.bf16.mxu0 %v1819
        %1840 = vmatpush1.bf16.msra.mxu0 %v1818
        %1841 = vmatprep.subr.bf16.mxu0 %v1823
        %1842 = vmatpush1.bf16.msra.mxu0 %v1822
        %1843 = vmatprep.subr.bf16.mxu0 0
        %1844 = vmatpush1.bf16.msra.mxu0 0
        %1845 = vmatprep.subr.bf16.mxu0 0
        %1846 = vmatpush1.bf16.msra.mxu0 0
        %1847 = vmatprep.subr.bf16.mxu0 0
        %1848 = vmatpush1.bf16.msra.mxu0 0
        %1849 = vmatprep.subr.bf16.mxu0 0
        %1850 = vmatpush1.bf16.msra.mxu0 0
        %1851 = vmatprep.subr.bf16.mxu0 0
        %1852 = vmatpush1.bf16.msra.mxu0 0
        %1853 = vmatprep.subr.bf16.mxu0 0
        %1854 = vmatpush1.bf16.msra.mxu0 0
        %1855 = vmatprep.subr.bf16.mxu0 0
        %1856 = vmatpush1.bf16.msra.mxu0 0
        %1857 = vmatprep.subr.bf16.mxu0 0
        %1858 = vmatpush1.bf16.msra.mxu0 0
        %1859 = vmatprep.subr.bf16.mxu0 0
        %1860 = vmatpush1.bf16.msra.mxu0 0
        %1861 = vmatprep.subr.bf16.mxu0 0
        %1862 = vmatpush1.bf16.msra.mxu0 0
        %1863 = vmatprep.subr.bf16.mxu0 0
        %1864 = vmatpush1.bf16.msra.mxu0 0
        %1865 = vmatprep.subr.bf16.mxu0 0
        %1866 = vmatpush1.bf16.msra.mxu0 0
        %1867 = vmatprep.mubr.bf16.mxu0 0
        %1868 = vmatmul.mubr.bf16.gmra.mrb[0].mxu0 %v1833
        %v1869 = vpop.f32.mrb[0].mxu0
        %v1870 = vadd.f32 %v1830, %v1869
        %v1871 = vpop.f32.mrb[0].mxu0
        %v1872 = vadd.f32 %v1830, %v1871
        %v1873 = vpop.f32.mrb[0].mxu0
        %v1874 = vpop.f32.mrb[0].mxu0
        %1875 = vdwg.mxu0
        %1876 = vmatprep.subr.bf16.mxu0 %v1813
        %1877 = vmatpush1.bf16.msra.mxu0 %v1812
        %1878 = vmatprep.subr.bf16.mxu0 %v1817
        %1879 = vmatpush1.bf16.msra.mxu0 %v1816
        %1880 = vmatprep.subr.bf16.mxu0 %v1821
        %1881 = vmatpush1.bf16.msra.mxu0 %v1820
        %1882 = vmatprep.subr.bf16.mxu0 %v1825
        %1883 = vmatpush1.bf16.msra.mxu0 %v1824
        %1884 = vmatprep.subr.bf16.mxu0 0
        %1885 = vmatpush1.bf16.msra.mxu0 0
        %1886 = vmatprep.subr.bf16.mxu0 0
        %1887 = vmatpush1.bf16.msra.mxu0 0
        %1888 = vmatprep.subr.bf16.mxu0 0
        %1889 = vmatpush1.bf16.msra.mxu0 0
        %1890 = vmatprep.subr.bf16.mxu0 0
        %1891 = vmatpush1.bf16.msra.mxu0 0
        %1892 = vmatprep.subr.bf16.mxu0 0
        %1893 = vmatpush1.bf16.msra.mxu0 0
        %1894 = vmatprep.subr.bf16.mxu0 0
        %1895 = vmatpush1.bf16.msra.mxu0 0
        %1896 = vmatprep.subr.bf16.mxu0 0
        %1897 = vmatpush1.bf16.msra.mxu0 0
        %1898 = vmatprep.subr.bf16.mxu0 0
        %1899 = vmatpush1.bf16.msra.mxu0 0
        %1900 = vmatprep.subr.bf16.mxu0 0
        %1901 = vmatpush1.bf16.msra.mxu0 0
        %1902 = vmatprep.subr.bf16.mxu0 0
        %1903 = vmatpush1.bf16.msra.mxu0 0
        %1904 = vmatprep.subr.bf16.mxu0 0
        %1905 = vmatpush1.bf16.msra.mxu0 0
        %1906 = vmatprep.subr.bf16.mxu0 0
        %1907 = vmatpush1.bf16.msra.mxu0 0
        %1908 = vmatprep.mubr.bf16.mxu0 0
        %1909 = vmatmul.mubr.bf16.gmra.mrb[0].mxu0 %v1833
        %v1910 = vpop.f32.mrb[0].mxu0
        %v1911 = vadd.f32 %v1830, %v1910
        %v1912 = vpop.f32.mrb[0].mxu0
        %v1913 = vadd.f32 %v1830, %v1912
        %v1914 = vpop.f32.mrb[0].mxu0
        %v1915 = vpop.f32.mrb[0].mxu0
        %1916 = vdwg.mxu0
        %v1921 = vcombine.low %v1870, %v1872
        %v1922 = vcombine.low %v1911, %v1913
        %v1924 = vunpack.c.l.s4 1966171168
        %v1925 = vunpack.c.0.s8 %v1924
        %v1926 = vlaneseq
        %v1927 = vshrl.u32 %v1926, 7
        %v1928 = vsub.s32 %v1925, %v1927
        %v1929 = vrot.slane %v1921, %v1928
        %v1931 = vunpack.c.l.s4 1966171168
        %v1932 = vunpack.c.0.s8 %v1931
        %v1933 = vlaneseq
        %v1934 = vshrl.u32 %v1933, 7
        %v1935 = vsub.s32 %v1932, %v1934
        %v1936 = vrot.slane %v1922, %v1935
        %v1937 = vcombine.low %v1929, %v1936
        %v1939 = vunpack.c.l.s4 1966171168
        %v1940 = vunpack.c.0.s8 %v1939
        %v1941 = vlaneseq
        %v1942 = vshrl.u32 %v1941, 7
        %v1943 = vsub.s32 %v1940, %v1942
        %v1944 = vrot.slane %v1937, %v1943
        %v1946 = vlaneseq
        %vm1947 = vcmp.ge.s32.totalorder %v1946, 0
        %vm1948 = vcmp.lt.s32.totalorder %v1946, 512
        %vm1949 = vmand %vm1947, %vm1948
        %1950 = vst.msk [vmem:[%s336] sm:$0xf] %vm1949, %v1944
        %s1951 = sand.u32 %s165, 1
        %s1952 = scalar_lea.sflag [#allocation4], %s1951
        %s1953 = sand.u32 %s165, 1
        %s1954 = smul.addr %s1953, 4
        %s1955 = scalar_lea.vmem [#allocation13], %s1954
        // Predicated region
        $region69: #{tpu_custom_call.1} parent=43 // pred_check
          %p1956 = pneg %p175
        $region70: #{tpu_custom_call.1} parent=43 // pred_check_branch
          %1958 = sbr.rel (%p1956) target = $region72
        $region71: #{tpu_custom_call.1} parent=43 // pred_region
          %s1959 = smul.u32 4, %s26
          %s1961 = ssub.s32 64, 64
          %1962 = vsyncadd %s1952, %s1961
          %s1963 = smul.addr %s1959, 16
          %s1964 = scalar_lea.hbm %s6, %s1963
          %s1966 = sshll.u32 %s1955, 4
          %s1967 = int_to_ptr.vmem [resolvable:$true] %s1966
          %1969 = dma.vmem_to_hbm [thread:$0]  %s1967, 64, %s1964, %s1952
        $region72: #{tpu_custom_call.1} parent=43 // pred_fallthru
          _
      $region44: #{tpu_custom_call.1} parent=5 // pred_fallthru
        _
      %p1970 = scmp.le.s32.totalorder 2, %s21
      // Predicated region
      $region73: #{tpu_custom_call.1} parent=5 // pred_check
        %p1971 = pneg %p1970
      $region74: #{tpu_custom_call.1} parent=5 // pred_check_branch
        %1973 = sbr.rel (%p1971) target = $region76
      $region75: #{tpu_custom_call.1} parent=5 // pred_region
        %s1974 = ssub.s32 %s21, 2
        // Predicated region
        $region77: #{tpu_custom_call.1} parent=75 // pred_check
          %p1975 = pneg %p181
        $region78: #{tpu_custom_call.1} parent=75 // pred_check_branch
          %1977 = sbr.rel (%p1975) target = $region80
        $region79: #{tpu_custom_call.1} parent=75 // pred_region
          %s1978 = sand.u32 %s166, 1
          %s1979 = scalar_lea.sflag [#allocation4], %s1978
          %s1980 = sand.u32 %s166, 1
          %s1981 = smul.addr %s1980, 4
          %s1982 = scalar_lea.vmem [#allocation13], %s1981
          %1983 = dma.done %s1979, 64
        $region80: #{tpu_custom_call.1} parent=75 // pred_fallthru
          _
      $region76: #{tpu_custom_call.1} parent=5 // pred_fallthru
        _
    $region6: #{tpu_custom_call.1} parent=1 // loop_footer
      %s25 = sadd.s32 1, %s21
    $region7: #{tpu_custom_call.1} parent=1 // loop_footer_branch
      %20 = sbr.rel target = $region3
    $region8: #{tpu_custom_call.1} parent=1 // loop_exit
      _
    %1984 = vsyncpa [#allocation3], 1
    %s1985 = scalar_lea.sflag [#allocation3], 1
    %1986 = vsyncpa %s1985, 1
    %1987 = vsyncpa [#allocation6], 1
    %1988 = vsyncpa [#allocation9], 1
    %1989 = vsyncpa [#allocation12], 1
    %1990 = vsyncpa [#allocation4], 1
    %s1991 = scalar_lea.sflag [#allocation4], 1
    %1992 = vsyncpa %s1991, 1

</llo_original>
